<compile_context>
chip_gen: v5e
topology: v5e:2x2
jax: 0.10.0
libtpu: 0.0.40
codegen_flags: <defaults>
</compile_context>

<pallas_src>
import functools
import math

import jax
import jax.numpy as jnp
from jax.experimental import pallas as pl
from jax.experimental.pallas import tpu as pltpu


def _mha_kernel(xT_ref, wqkvT_ref, bqkvT_ref, woT_ref, boT_ref, memkT_ref, memvT_ref,
                out_ref, *, batch, seq):
    D, T = xT_ref.shape                      # channel-major: (d_model, bs*seq)
    H, d_k, P = memkT_ref.shape
    B, S = batch, seq
    cdt = wqkvT_ref.dtype                    # MXU operand dtype (bf16 in production, f32 in check)

    xT_f32 = xT_ref[...].astype(jnp.float32)                                 # residual, f32

    # Fused QKV projection, channel-major: ONE MXU pass (M=3D, N=B*S, K=D), f32 accumulate.
    # The 1/sqrt(d_k) score scale is pre-folded into the q rows of wqkvT/bqkvT at fuse time.
    qkvT = jnp.dot(wqkvT_ref[...], xT_f32.astype(cdt),
                   preferred_element_type=jnp.float32) + bqkvT_ref[...]      # (3D, T) f32

    memkT = memkT_ref[...]                   # (H, d_k, P) -- batch-shared, never broadcast
    memvT = memvT_ref[...]

    ctx_parts = []
    for b in range(B):                       # unrolled (B tiny); heads batched inside the einsums
        blk = qkvT[:, b * S:(b + 1) * S].reshape(3, H, d_k, S)               # (3, H, dk, S)
        q_hds, k_hds, v_hds = blk[0], blk[1], blk[2]
        q_hsd = jnp.transpose(q_hds, (0, 2, 1)).astype(cdt)                  # (H, S, dk)
        k_hds = k_hds.astype(cdt)                                            # (H, dk, S)
        v_hds = v_hds.astype(cdt)                                            # (H, dk, S)

        # Scores in two parts: self keys + persistent-memory keys (no k_all materialisation).
        s_self = jnp.einsum('hqd,hdk->hqk', q_hsd, k_hds,
                            preferred_element_type=jnp.float32)              # (H, S, S)
        s_mem = jnp.einsum('hqd,hdp->hqp', q_hsd, memkT,
                           preferred_element_type=jnp.float32)               # (H, S, P)

        # Joint softmax over (self ++ memory) keys, all in f32 (v5e: no bf16 VPU/EUP).
        m = jnp.maximum(jnp.max(s_self, axis=-1, keepdims=True),
                        jnp.max(s_mem, axis=-1, keepdims=True))
        e_self = jnp.exp(s_self - m)
        e_mem = jnp.exp(s_mem - m)
        inv = pl.reciprocal(jnp.sum(e_self, axis=-1, keepdims=True)
                            + jnp.sum(e_mem, axis=-1, keepdims=True), approx=False)
        p_self = (e_self * inv).astype(cdt)
        p_mem = (e_mem * inv).astype(cdt)

        # PV directly in channel-major orientation -> ctx needs no output-side transpose.
        ctxT = jnp.einsum('hdk,hqk->hdq', v_hds, p_self,
                          preferred_element_type=jnp.float32)                # (H, dk, S)
        ctxT += jnp.einsum('hdp,hqp->hdq', memvT, p_mem,
                           preferred_element_type=jnp.float32)
        ctx_parts.append(ctxT.reshape(D, S))

    ctxT_full = jnp.concatenate(ctx_parts, axis=1).astype(cdt)               # (D, T)

    # Output projection + bias + residual: ONE MXU pass (K = D).
    oT = (jnp.dot(woT_ref[...], ctxT_full, preferred_element_type=jnp.float32)
          + boT_ref[...] + xT_f32)
    out_ref[...] = oT.astype(out_ref.dtype)


def fuse_params(params, *, n_heads, compute_dtype=jnp.bfloat16):
    """One-time parameter fusion (not per call): fused+transposed QKV/out weights, score scale
    folded into the q rows, persistent memory pre-transposed; MXU operands stored in bf16."""
    d_model = params["wq"].shape[0]
    assert d_model % n_heads == 0, "d_model must be divisible by n_heads"
    d_k = d_model // n_heads
    inv_sqrt_dk = 1.0 / math.sqrt(d_k)
    wqkvT = jnp.concatenate(
        [params["wq"] * inv_sqrt_dk, params["wk"], params["wv"]], axis=1).T          # (3D, D)
    bqkvT = jnp.concatenate(
        [params["bq"] * inv_sqrt_dk, params["bk"], params["bv"]], axis=1).T           # (3D, 1)
    return {
        "wqkvT": wqkvT.astype(compute_dtype),
        "bqkvT": bqkvT.astype(jnp.float32),
        "woT": params["wo"].T.astype(compute_dtype),                                  # (D, D)
        "boT": params["bo"].T.astype(jnp.float32),                                    # (D, 1)
        "memkT": jnp.transpose(params["mem_k"], (0, 2, 1)).astype(compute_dtype),     # (H, dk, P)
        "memvT": jnp.transpose(params["mem_v"], (0, 2, 1)).astype(compute_dtype),     # (H, dk, P)
    }


def multi_head_attention(x, fused, *, n_heads):
    """x: (bs, fnum, fmap, fmap) -> (bs, fnum, fmap, fmap).  `fused` comes from fuse_params."""
    bs, fnum, fmap, _ = x.shape
    seq = fmap * fmap
    d_model = fnum
    assert d_model % n_heads == 0, "d_model must be divisible by n_heads"
    d_k = d_model // n_heads
    n_persis = fused["memkT"].shape[2]
    T = bs * seq

    # Channel-major, token-fused slab (tiny wrapper-side XLA transpose; cheaper than an
    # in-kernel XLU transpose while S < 128).
    xT = jnp.transpose(x.reshape(bs, fnum, seq), (1, 0, 2)).reshape(fnum, T)

    kernel = functools.partial(_mha_kernel, batch=bs, seq=seq)

    def full(shape):
        return pl.BlockSpec(shape, lambda *_: (0,) * len(shape))

    outT = pl.pallas_call(
        kernel,
        out_shape=jax.ShapeDtypeStruct((fnum, T), x.dtype),
        grid_spec=pltpu.PrefetchScalarGridSpec(
            num_scalar_prefetch=0,
            grid=(1,),                        # single step; batch folded into the kernel.
            in_specs=[
                full((fnum, T)),              # xT (channel-major)
                full((3 * d_model, d_model)),  # fused, transposed Wqkv (scale folded in)
                full((3 * d_model, 1)),        # fused bqkv (transposed)
                full((d_model, d_model)),      # Wo (transposed)
                full((d_model, 1)),            # bo (transposed)
                full((n_heads, d_k, n_persis)),  # persistent keys (pre-transposed)
                full((n_heads, d_k, n_persis)),  # persistent values (pre-transposed)
            ],
            out_specs=full((fnum, T)),
        ),
        compiler_params=pltpu.CompilerParams(dimension_semantics=("arbitrary",)),
    )(xT, fused["wqkvT"], fused["bqkvT"], fused["woT"], fused["boT"],
      fused["memkT"], fused["memvT"])

    # Back to NCHW with one tiny XLA transpose.
    return jnp.transpose(outT.reshape(fnum, bs, seq), (1, 0, 2)).reshape(bs, fnum, fmap, fmap)


def _reference(x, params, *, n_heads):
    """Pure-JAX f32 reference with identical semantics, for verification."""
    bs, fnum, fmap, _ = x.shape
    seq = fmap * fmap
    d_model = fnum
    d_k = d_model // n_heads
    xs = jnp.transpose(x.reshape(bs, fnum, seq), (0, 2, 1)).astype(jnp.float32)

    q = xs @ params["wq"] + params["bq"]
    k = xs @ params["wk"] + params["bk"]
    v = xs @ params["wv"] + params["bv"]

    def split(t):  # (B,S,D) -> (B,H,S,dk)
        return jnp.transpose(t.reshape(bs, seq, n_heads, d_k), (0, 2, 1, 3))

    qh, kh, vh = split(q), split(k), split(v)
    mk = jnp.broadcast_to(params["mem_k"], (bs, n_heads, params["mem_k"].shape[1], d_k))
    mv = jnp.broadcast_to(params["mem_v"], (bs, n_heads, params["mem_v"].shape[1], d_k))
    k_all = jnp.concatenate([kh, mk], axis=2)
    v_all = jnp.concatenate([vh, mv], axis=2)

    scores = jnp.einsum("bhqd,bhkd->bhqk", qh, k_all) / math.sqrt(d_k)
    p = jax.nn.softmax(scores, axis=-1)
    ctx = jnp.einsum("bhqk,bhkd->bhqd", p, v_all)
    ctx = jnp.transpose(ctx, (0, 2, 1, 3)).reshape(bs, seq, d_model)
    out = ctx @ params["wo"] + params["bo"] + xs
    return jnp.transpose(out, (0, 2, 1)).reshape(bs, fnum, fmap, fmap)


def init_params(key, d_model, n_heads, n_persis):
    d_k = d_model // n_heads
    ks = jax.random.split(key, 10)
    scale = 1.0 / math.sqrt(d_model)
    return {
        "wq": jax.random.normal(ks[0], (d_model, d_model), jnp.float32) * scale,
        "wk": jax.random.normal(ks[1], (d_model, d_model), jnp.float32) * scale,
        "wv": jax.random.normal(ks[2], (d_model, d_model), jnp.float32) * scale,
        "wo": jax.random.normal(ks[3], (d_model, d_model), jnp.float32) * scale,
        "bq": jax.random.normal(ks[4], (1, d_model), jnp.float32) * 0.1,
        "bk": jax.random.normal(ks[5], (1, d_model), jnp.float32) * 0.1,
        "bv": jax.random.normal(ks[6], (1, d_model), jnp.float32) * 0.1,
        "bo": jax.random.normal(ks[7], (1, d_model), jnp.float32) * 0.1,
        "mem_k": jax.random.normal(ks[8], (n_heads, n_persis, d_k), jnp.float32) * scale,
        "mem_v": jax.random.normal(ks[9], (n_heads, n_persis, d_k), jnp.float32) * scale,
    }


if __name__ == "__main__":
    # small shapes: bs=2, fnum=d_model=32, fmap=4 -> seq=16, h=4 heads, n_persis=8
    bs, d_model, fmap = 2, 32, 4
    n_heads, n_persis = 4, 8

    key = jax.random.PRNGKey(0)
    kx, kp = jax.random.split(key)
    x = jax.random.normal(kx, (bs, d_model, fmap, fmap), jnp.float32)
    params = init_params(kp, d_model, n_heads, n_persis)

    with jax.default_matmul_precision("float32"):
        ref = _reference(x, params, n_heads=n_heads)

    # 1) Structural check: f32 MXU operands, tighter tolerance.
    fused_f32 = fuse_params(params, n_heads=n_heads, compute_dtype=jnp.float32)
    out_f32 = jax.block_until_ready(multi_head_attention(x, fused_f32, n_heads=n_heads))
    assert out_f32.shape == x.shape
    assert jnp.allclose(out_f32, ref, atol=2e-2, rtol=2e-2), "f32 kernel mismatch vs reference"

    # 2) Production path: bf16 MXU operands (f32 accumulation + f32 softmax, exact reciprocal).
    #    Looser tolerance only covers bf16 operand rounding vs the f32 reference; structural
    #    errors would be orders of magnitude larger.
    fused_bf16 = fuse_params(params, n_heads=n_heads, compute_dtype=jnp.bfloat16)
    out_bf16 = jax.block_until_ready(multi_head_attention(x, fused_bf16, n_heads=n_heads))
    assert out_bf16.shape == x.shape
    assert jnp.allclose(out_bf16, ref, atol=1e-1, rtol=1e-1), "bf16 kernel mismatch vs reference"

    print("KERNEL_OK")
</pallas_src>

<mosaic_0001>
module attributes {stable_mosaic.version = 11 : i64} {
  func.func @_mha_kernel(%arg0: i32, %arg1: memref<32x32xf32, #tpu.memory_space<vmem>>, %arg2: memref<96x32xf32, #tpu.memory_space<vmem>>, %arg3: memref<96x1xf32, #tpu.memory_space<vmem>>, %arg4: memref<32x32xf32, #tpu.memory_space<vmem>>, %arg5: memref<32x1xf32, #tpu.memory_space<vmem>>, %arg6: memref<4x8x8xf32, #tpu.memory_space<vmem>>, %arg7: memref<4x8x8xf32, #tpu.memory_space<vmem>>, %arg8: memref<32x32xf32, #tpu.memory_space<vmem>>) attributes {dimension_semantics = [#tpu.dimension_semantics<arbitrary>], iteration_bounds = array<i64: 1>, scalar_prefetch = 0 : i64, scratch_operands = 0 : i64, tpu.core_type = #tpu.core_type<tc>, window_params = [{pipeline_mode = #tpu.pipeline_mode<synchronous>, transform_indices = @transform_0, window_bounds = array<i64: 32, 32>}, {pipeline_mode = #tpu.pipeline_mode<synchronous>, transform_indices = @transform_1, window_bounds = array<i64: 96, 32>}, {pipeline_mode = #tpu.pipeline_mode<synchronous>, transform_indices = @transform_2, window_bounds = array<i64: 96, 1>}, {pipeline_mode = #tpu.pipeline_mode<synchronous>, transform_indices = @transform_3, window_bounds = array<i64: 32, 32>}, {pipeline_mode = #tpu.pipeline_mode<synchronous>, transform_indices = @transform_4, window_bounds = array<i64: 32, 1>}, {pipeline_mode = #tpu.pipeline_mode<synchronous>, transform_indices = @transform_5, window_bounds = array<i64: 4, 8, 8>}, {pipeline_mode = #tpu.pipeline_mode<synchronous>, transform_indices = @transform_6, window_bounds = array<i64: 4, 8, 8>}, {pipeline_mode = #tpu.pipeline_mode<synchronous>, transform_indices = @transform_7, window_bounds = array<i64: 32, 32>}]} {
    %c0 = arith.constant 0 : index
    %c0_0 = arith.constant 0 : index
    %0 = vector.load %arg1[%c0, %c0_0] : memref<32x32xf32, #tpu.memory_space<vmem>>, vector<32x32xf32>
    %c0_1 = arith.constant 0 : index
    %c0_2 = arith.constant 0 : index
    %1 = vector.load %arg2[%c0_1, %c0_2] : memref<96x32xf32, #tpu.memory_space<vmem>>, vector<96x32xf32>
    %cst = arith.constant dense<0.000000e+00> : vector<96x32xf32>
    %2 = tpu.matmul %1, %0, %cst {dimension_numbers = #tpu.dot_dimension_numbers<[1], [0], [0], [1], [0, 0, 1, 1], [], []>} : vector<96x32xf32>, vector<32x32xf32>, vector<96x32xf32> -> vector<96x32xf32>
    %c0_3 = arith.constant 0 : index
    %c0_4 = arith.constant 0 : index
    %3 = vector.load %arg3[%c0_3, %c0_4] : memref<96x1xf32, #tpu.memory_space<vmem>>, vector<96x1xf32>
    %4 = vector.broadcast %3 : vector<96x1xf32> to vector<96x32xf32>
    %5 = arith.addf %2, %4 : vector<96x32xf32>
    %c0_5 = arith.constant 0 : index
    %c0_6 = arith.constant 0 : index
    %c0_7 = arith.constant 0 : index
    %6 = vector.load %arg6[%c0_5, %c0_6, %c0_7] : memref<4x8x8xf32, #tpu.memory_space<vmem>>, vector<4x8x8xf32>
    %c0_8 = arith.constant 0 : index
    %c0_9 = arith.constant 0 : index
    %c0_10 = arith.constant 0 : index
    %7 = vector.load %arg7[%c0_8, %c0_9, %c0_10] : memref<4x8x8xf32, #tpu.memory_space<vmem>>, vector<4x8x8xf32>
    %8 = vector.extract_strided_slice %5 {offsets = [0, 0], sizes = [96, 16], strides = [1, 1]} : vector<96x32xf32> to vector<96x16xf32>
    %9 = vector.shape_cast %8 : vector<96x16xf32> to vector<3x4x8x16xf32>
    %10 = vector.extract_strided_slice %9 {offsets = [0, 0, 0, 0], sizes = [1, 4, 8, 16], strides = [1, 1, 1, 1]} : vector<3x4x8x16xf32> to vector<1x4x8x16xf32>
    %11 = vector.shape_cast %10 : vector<1x4x8x16xf32> to vector<4x8x16xf32>
    %12 = vector.extract_strided_slice %9 {offsets = [1, 0, 0, 0], sizes = [1, 4, 8, 16], strides = [1, 1, 1, 1]} : vector<3x4x8x16xf32> to vector<1x4x8x16xf32>
    %13 = vector.shape_cast %12 : vector<1x4x8x16xf32> to vector<4x8x16xf32>
    %14 = vector.extract_strided_slice %9 {offsets = [2, 0, 0, 0], sizes = [1, 4, 8, 16], strides = [1, 1, 1, 1]} : vector<3x4x8x16xf32> to vector<1x4x8x16xf32>
    %15 = vector.shape_cast %14 : vector<1x4x8x16xf32> to vector<4x8x16xf32>
    %16 = tpu.transpose %11, [0, 2, 1] : vector<4x8x16xf32> -> vector<4x16x8xf32>
    "tpu.trace_start"() <{level = 10 : i32, message = "hqd,hdk->hqk"}> : () -> ()
    %cst_11 = arith.constant dense<0.000000e+00> : vector<4x16x16xf32>
    %17 = tpu.matmul %16, %13, %cst_11 {dimension_numbers = #tpu.dot_dimension_numbers<[2], [1], [1], [2], [0, 0, 0, 1, 1, 2], [0], [0]>} : vector<4x16x8xf32>, vector<4x8x16xf32>, vector<4x16x16xf32> -> vector<4x16x16xf32>
    "tpu.trace_stop"() : () -> ()
    "tpu.trace_start"() <{level = 10 : i32, message = "hqd,hdp->hqp"}> : () -> ()
    %cst_12 = arith.constant dense<0.000000e+00> : vector<4x16x8xf32>
    %18 = tpu.matmul %16, %6, %cst_12 {dimension_numbers = #tpu.dot_dimension_numbers<[2], [1], [1], [2], [0, 0, 0, 1, 1, 2], [0], [0]>} : vector<4x16x8xf32>, vector<4x8x8xf32>, vector<4x16x8xf32> -> vector<4x16x8xf32>
    "tpu.trace_stop"() : () -> ()
    %cst_13 = arith.constant dense<0xFF800000> : vector<4x16xf32>
    %19 = vector.multi_reduction <maximumf>, %17, %cst_13 [2] : vector<4x16x16xf32> to vector<4x16xf32>
    %20 = vector.shape_cast %19 : vector<4x16xf32> to vector<4x16x1xf32>
    %cst_14 = arith.constant dense<0xFF800000> : vector<4x16xf32>
    %21 = vector.multi_reduction <maximumf>, %18, %cst_14 [2] : vector<4x16x8xf32> to vector<4x16xf32>
    %22 = vector.shape_cast %21 : vector<4x16xf32> to vector<4x16x1xf32>
    %23 = arith.maximumf %20, %22 : vector<4x16x1xf32>
    %24 = vector.broadcast %23 : vector<4x16x1xf32> to vector<4x16x16xf32>
    %25 = arith.subf %17, %24 : vector<4x16x16xf32>
    %26 = math.exp %25 : vector<4x16x16xf32>
    %27 = vector.broadcast %23 : vector<4x16x1xf32> to vector<4x16x8xf32>
    %28 = arith.subf %18, %27 : vector<4x16x8xf32>
    %29 = math.exp %28 : vector<4x16x8xf32>
    %cst_15 = arith.constant dense<0.000000e+00> : vector<4x16xf32>
    %30 = vector.multi_reduction <add>, %26, %cst_15 [2] : vector<4x16x16xf32> to vector<4x16xf32>
    %31 = vector.shape_cast %30 : vector<4x16xf32> to vector<4x16x1xf32>
    %cst_16 = arith.constant dense<0.000000e+00> : vector<4x16xf32>
    %32 = vector.multi_reduction <add>, %29, %cst_16 [2] : vector<4x16x8xf32> to vector<4x16xf32>
    %33 = vector.shape_cast %32 : vector<4x16xf32> to vector<4x16x1xf32>
    %34 = arith.addf %31, %33 : vector<4x16x1xf32>
    %35 = tpu.reciprocal %34 : vector<4x16x1xf32> -> vector<4x16x1xf32>
    %36 = vector.broadcast %35 : vector<4x16x1xf32> to vector<4x16x16xf32>
    %37 = arith.mulf %26, %36 : vector<4x16x16xf32>
    %38 = vector.broadcast %35 : vector<4x16x1xf32> to vector<4x16x8xf32>
    %39 = arith.mulf %29, %38 : vector<4x16x8xf32>
    "tpu.trace_start"() <{level = 10 : i32, message = "hdk,hqk->hdq"}> : () -> ()
    %cst_17 = arith.constant dense<0.000000e+00> : vector<4x8x16xf32>
    %40 = tpu.matmul %15, %37, %cst_17 {dimension_numbers = #tpu.dot_dimension_numbers<[2], [2], [1], [1], [0, 0, 0, 1, 1, 1], [0], [0]>} : vector<4x8x16xf32>, vector<4x16x16xf32>, vector<4x8x16xf32> -> vector<4x8x16xf32>
    "tpu.trace_stop"() : () -> ()
    "tpu.trace_start"() <{level = 10 : i32, message = "hdp,hqp->hdq"}> : () -> ()
    %cst_18 = arith.constant dense<0.000000e+00> : vector<4x8x16xf32>
    %41 = tpu.matmul %7, %39, %cst_18 {dimension_numbers = #tpu.dot_dimension_numbers<[2], [2], [1], [1], [0, 0, 0, 1, 1, 1], [0], [0]>} : vector<4x8x8xf32>, vector<4x16x8xf32>, vector<4x8x16xf32> -> vector<4x8x16xf32>
    "tpu.trace_stop"() : () -> ()
    %42 = arith.addf %40, %41 : vector<4x8x16xf32>
    %43 = vector.shape_cast %42 : vector<4x8x16xf32> to vector<32x16xf32>
    %44 = vector.extract_strided_slice %5 {offsets = [0, 16], sizes = [96, 16], strides = [1, 1]} : vector<96x32xf32> to vector<96x16xf32>
    %45 = vector.shape_cast %44 : vector<96x16xf32> to vector<3x4x8x16xf32>
    %46 = vector.extract_strided_slice %45 {offsets = [0, 0, 0, 0], sizes = [1, 4, 8, 16], strides = [1, 1, 1, 1]} : vector<3x4x8x16xf32> to vector<1x4x8x16xf32>
    %47 = vector.shape_cast %46 : vector<1x4x8x16xf32> to vector<4x8x16xf32>
    %48 = vector.extract_strided_slice %45 {offsets = [1, 0, 0, 0], sizes = [1, 4, 8, 16], strides = [1, 1, 1, 1]} : vector<3x4x8x16xf32> to vector<1x4x8x16xf32>
    %49 = vector.shape_cast %48 : vector<1x4x8x16xf32> to vector<4x8x16xf32>
    %50 = vector.extract_strided_slice %45 {offsets = [2, 0, 0, 0], sizes = [1, 4, 8, 16], strides = [1, 1, 1, 1]} : vector<3x4x8x16xf32> to vector<1x4x8x16xf32>
    %51 = vector.shape_cast %50 : vector<1x4x8x16xf32> to vector<4x8x16xf32>
    %52 = tpu.transpose %47, [0, 2, 1] : vector<4x8x16xf32> -> vector<4x16x8xf32>
    "tpu.trace_start"() <{level = 10 : i32, message = "hqd,hdk->hqk"}> : () -> ()
    %cst_19 = arith.constant dense<0.000000e+00> : vector<4x16x16xf32>
    %53 = tpu.matmul %52, %49, %cst_19 {dimension_numbers = #tpu.dot_dimension_numbers<[2], [1], [1], [2], [0, 0, 0, 1, 1, 2], [0], [0]>} : vector<4x16x8xf32>, vector<4x8x16xf32>, vector<4x16x16xf32> -> vector<4x16x16xf32>
    "tpu.trace_stop"() : () -> ()
    "tpu.trace_start"() <{level = 10 : i32, message = "hqd,hdp->hqp"}> : () -> ()
    %cst_20 = arith.constant dense<0.000000e+00> : vector<4x16x8xf32>
    %54 = tpu.matmul %52, %6, %cst_20 {dimension_numbers = #tpu.dot_dimension_numbers<[2], [1], [1], [2], [0, 0, 0, 1, 1, 2], [0], [0]>} : vector<4x16x8xf32>, vector<4x8x8xf32>, vector<4x16x8xf32> -> vector<4x16x8xf32>
    "tpu.trace_stop"() : () -> ()
    %cst_21 = arith.constant dense<0xFF800000> : vector<4x16xf32>
    %55 = vector.multi_reduction <maximumf>, %53, %cst_21 [2] : vector<4x16x16xf32> to vector<4x16xf32>
    %56 = vector.shape_cast %55 : vector<4x16xf32> to vector<4x16x1xf32>
    %cst_22 = arith.constant dense<0xFF800000> : vector<4x16xf32>
    %57 = vector.multi_reduction <maximumf>, %54, %cst_22 [2] : vector<4x16x8xf32> to vector<4x16xf32>
    %58 = vector.shape_cast %57 : vector<4x16xf32> to vector<4x16x1xf32>
    %59 = arith.maximumf %56, %58 : vector<4x16x1xf32>
    %60 = vector.broadcast %59 : vector<4x16x1xf32> to vector<4x16x16xf32>
    %61 = arith.subf %53, %60 : vector<4x16x16xf32>
    %62 = math.exp %61 : vector<4x16x16xf32>
    %63 = vector.broadcast %59 : vector<4x16x1xf32> to vector<4x16x8xf32>
    %64 = arith.subf %54, %63 : vector<4x16x8xf32>
    %65 = math.exp %64 : vector<4x16x8xf32>
    %cst_23 = arith.constant dense<0.000000e+00> : vector<4x16xf32>
    %66 = vector.multi_reduction <add>, %62, %cst_23 [2] : vector<4x16x16xf32> to vector<4x16xf32>
    %67 = vector.shape_cast %66 : vector<4x16xf32> to vector<4x16x1xf32>
    %cst_24 = arith.constant dense<0.000000e+00> : vector<4x16xf32>
    %68 = vector.multi_reduction <add>, %65, %cst_24 [2] : vector<4x16x8xf32> to vector<4x16xf32>
    %69 = vector.shape_cast %68 : vector<4x16xf32> to vector<4x16x1xf32>
    %70 = arith.addf %67, %69 : vector<4x16x1xf32>
    %71 = tpu.reciprocal %70 : vector<4x16x1xf32> -> vector<4x16x1xf32>
    %72 = vector.broadcast %71 : vector<4x16x1xf32> to vector<4x16x16xf32>
    %73 = arith.mulf %62, %72 : vector<4x16x16xf32>
    %74 = vector.broadcast %71 : vector<4x16x1xf32> to vector<4x16x8xf32>
    %75 = arith.mulf %65, %74 : vector<4x16x8xf32>
    "tpu.trace_start"() <{level = 10 : i32, message = "hdk,hqk->hdq"}> : () -> ()
    %cst_25 = arith.constant dense<0.000000e+00> : vector<4x8x16xf32>
    %76 = tpu.matmul %51, %73, %cst_25 {dimension_numbers = #tpu.dot_dimension_numbers<[2], [2], [1], [1], [0, 0, 0, 1, 1, 1], [0], [0]>} : vector<4x8x16xf32>, vector<4x16x16xf32>, vector<4x8x16xf32> -> vector<4x8x16xf32>
    "tpu.trace_stop"() : () -> ()
    "tpu.trace_start"() <{level = 10 : i32, message = "hdp,hqp->hdq"}> : () -> ()
    %cst_26 = arith.constant dense<0.000000e+00> : vector<4x8x16xf32>
    %77 = tpu.matmul %7, %75, %cst_26 {dimension_numbers = #tpu.dot_dimension_numbers<[2], [2], [1], [1], [0, 0, 0, 1, 1, 1], [0], [0]>} : vector<4x8x8xf32>, vector<4x16x8xf32>, vector<4x8x16xf32> -> vector<4x8x16xf32>
    "tpu.trace_stop"() : () -> ()
    %78 = arith.addf %76, %77 : vector<4x8x16xf32>
    %79 = vector.shape_cast %78 : vector<4x8x16xf32> to vector<32x16xf32>
    %80 = tpu.concatenate %43, %79 in 1 : vector<32x16xf32>, vector<32x16xf32> -> vector<32x32xf32>
    %c0_27 = arith.constant 0 : index
    %c0_28 = arith.constant 0 : index
    %81 = vector.load %arg4[%c0_27, %c0_28] : memref<32x32xf32, #tpu.memory_space<vmem>>, vector<32x32xf32>
    %cst_29 = arith.constant dense<0.000000e+00> : vector<32x32xf32>
    %82 = tpu.matmul %81, %80, %cst_29 {dimension_numbers = #tpu.dot_dimension_numbers<[1], [0], [0], [1], [0, 0, 1, 1], [], []>} : vector<32x32xf32>, vector<32x32xf32>, vector<32x32xf32> -> vector<32x32xf32>
    %c0_30 = arith.constant 0 : index
    %c0_31 = arith.constant 0 : index
    %83 = vector.load %arg5[%c0_30, %c0_31] : memref<32x1xf32, #tpu.memory_space<vmem>>, vector<32x1xf32>
    %84 = vector.broadcast %83 : vector<32x1xf32> to vector<32x32xf32>
    %85 = arith.addf %82, %84 : vector<32x32xf32>
    %86 = arith.addf %85, %0 : vector<32x32xf32>
    %c0_32 = arith.constant 0 : index
    %c0_33 = arith.constant 0 : index
    %87 = vector.load %arg8[%c0_32, %c0_33] : memref<32x32xf32, #tpu.memory_space<vmem>>, vector<32x32xf32>
    tpu.vector_store %arg8[%c0_32, %c0_33], %86 {strides = array<i32>} : memref<32x32xf32, #tpu.memory_space<vmem>>, vector<32x32xf32>,
    return
  }
  func.func @transform_0(%arg0: i32) -> (i32, i32) {
    %c0_i32 = arith.constant 0 : i32
    %c0_i32_0 = arith.constant 0 : i32
    %c0_i32_1 = arith.constant 0 : i32
    return %c0_i32, %c0_i32_0 : i32, i32
  }
  func.func @transform_1(%arg0: i32) -> (i32, i32) {
    %c0_i32 = arith.constant 0 : i32
    %c0_i32_0 = arith.constant 0 : i32
    %c0_i32_1 = arith.constant 0 : i32
    return %c0_i32, %c0_i32_0 : i32, i32
  }
  func.func @transform_2(%arg0: i32) -> (i32, i32) {
    %c0_i32 = arith.constant 0 : i32
    %c0_i32_0 = arith.constant 0 : i32
    %c0_i32_1 = arith.constant 0 : i32
    return %c0_i32, %c0_i32_0 : i32, i32
  }
  func.func @transform_3(%arg0: i32) -> (i32, i32) {
    %c0_i32 = arith.constant 0 : i32
    %c0_i32_0 = arith.constant 0 : i32
    %c0_i32_1 = arith.constant 0 : i32
    return %c0_i32, %c0_i32_0 : i32, i32
  }
  func.func @transform_4(%arg0: i32) -> (i32, i32) {
    %c0_i32 = arith.constant 0 : i32
    %c0_i32_0 = arith.constant 0 : i32
    %c0_i32_1 = arith.constant 0 : i32
    return %c0_i32, %c0_i32_0 : i32, i32
  }
  func.func @transform_5(%arg0: i32) -> (i32, i32, i32) {
    %c0_i32 = arith.constant 0 : i32
    %c0_i32_0 = arith.constant 0 : i32
    %c0_i32_1 = arith.constant 0 : i32
    %c0_i32_2 = arith.constant 0 : i32
    return %c0_i32, %c0_i32_0, %c0_i32_1 : i32, i32, i32
  }
  func.func @transform_6(%arg0: i32) -> (i32, i32, i32) {
    %c0_i32 = arith.constant 0 : i32
    %c0_i32_0 = arith.constant 0 : i32
    %c0_i32_1 = arith.constant 0 : i32
    %c0_i32_2 = arith.constant 0 : i32
    return %c0_i32, %c0_i32_0, %c0_i32_1 : i32, i32, i32
  }
  func.func @transform_7(%arg0: i32) -> (i32, i32) {
    %c0_i32 = arith.constant 0 : i32
    %c0_i32_0 = arith.constant 0 : i32
    %c0_i32_1 = arith.constant 0 : i32
    return %c0_i32, %c0_i32_0 : i32, i32
  }
}

</mosaic_0001>

<llo_original>
// kernel: tpu_custom_call.1
$region0: #{tpu_custom_call.1}
  #allocation0 [shape = 'u32[]', space=smem, size = 0x4, offset = 0x4, fixed_abs, tag = 'smem constant byte address 0x4 - core index']
  #allocation1 [shape = 'u32[72,128]{1,0:T(1,128)}', space=vmem, size = 0x9000, scoped, tag = 'internal scratch']
  %s0 = inlined_call_operand.vmem [shape: f32[32,32], index: 0, kind: input, shape index: {}]
  %s1 = inlined_call_operand.vmem [shape: f32[96,32], index: 1, kind: input, shape index: {}]
  %s2 = inlined_call_operand.vmem [shape: f32[96,1], index: 2, kind: input, shape index: {}]
  %s3 = inlined_call_operand.vmem [shape: f32[32,32], index: 3, kind: input, shape index: {}]
  %s4 = inlined_call_operand.vmem [shape: f32[32,1], index: 4, kind: input, shape index: {}]
  %s5 = inlined_call_operand.vmem [shape: f32[4,8,8], index: 5, kind: input, shape index: {}]
  %s6 = inlined_call_operand.vmem [shape: f32[4,8,8], index: 6, kind: input, shape index: {}]
  %s7 = inlined_call_operand.hbm [shape: f32[32,32], index: 7, kind: output, shape index: {}]
  %s8 = sld [smem:[#allocation0]]
  $region38: #{tpu_custom_call.1} parent=0
    _
  %s10 = ssub.s32 1, %s8
  %s11 = scalar_select 0, %s10, %s8
  $region1: #{tpu_custom_call.1} parent=0
    #allocation2 [shape = 'u8[16384]{0}', space=vmem, size = 0x4000, scoped, tag = 'output window, operand 0, single buffered']
    #allocation3 [shape = 's32[1]{0}', space=sflag, size = 0x4, scoped, tag = 'scoped memory for tpu_custom_call.1']
    %12 = vsyncpa [#allocation3], 0
    // Predicated region
    $region2: #{tpu_custom_call.1} parent=1 // pred_check
      _
    $region3: #{tpu_custom_call.1} parent=1 // pred_check_branch
      %14 = sbr.rel (0) target = $region5
    $region4: #{tpu_custom_call.1} parent=1 // pred_region
      _
    $region5: #{tpu_custom_call.1} parent=1 // pred_fallthru
      _
    // Predicated region
    $region6: #{tpu_custom_call.1} parent=1 // pred_check
      _
    $region7: #{tpu_custom_call.1} parent=1 // pred_check_branch
      %16 = sbr.rel (0) target = $region9
    $region8: #{tpu_custom_call.1} parent=1 // pred_region
      _
    $region9: #{tpu_custom_call.1} parent=1 // pred_fallthru
      _
    // Predicated region
    $region10: #{tpu_custom_call.1} parent=1 // pred_check
      _
    $region11: #{tpu_custom_call.1} parent=1 // pred_check_branch
      %18 = sbr.rel (0) target = $region13
    $region12: #{tpu_custom_call.1} parent=1 // pred_region
      _
    $region13: #{tpu_custom_call.1} parent=1 // pred_fallthru
      _
    // Predicated region
    $region14: #{tpu_custom_call.1} parent=1 // pred_check
      _
    $region15: #{tpu_custom_call.1} parent=1 // pred_check_branch
      %20 = sbr.rel (0) target = $region17
    $region16: #{tpu_custom_call.1} parent=1 // pred_region
      _
    $region17: #{tpu_custom_call.1} parent=1 // pred_fallthru
      _
    // Predicated region
    $region18: #{tpu_custom_call.1} parent=1 // pred_check
      _
    $region19: #{tpu_custom_call.1} parent=1 // pred_check_branch
      %22 = sbr.rel (0) target = $region21
    $region20: #{tpu_custom_call.1} parent=1 // pred_region
      _
    $region21: #{tpu_custom_call.1} parent=1 // pred_fallthru
      _
    // Predicated region
    $region22: #{tpu_custom_call.1} parent=1 // pred_check
      _
    $region23: #{tpu_custom_call.1} parent=1 // pred_check_branch
      %24 = sbr.rel (0) target = $region25
    $region24: #{tpu_custom_call.1} parent=1 // pred_region
      _
    $region25: #{tpu_custom_call.1} parent=1 // pred_fallthru
      _
    // Predicated region
    $region26: #{tpu_custom_call.1} parent=1 // pred_check
      _
    $region27: #{tpu_custom_call.1} parent=1 // pred_check_branch
      %26 = sbr.rel (0) target = $region29
    $region28: #{tpu_custom_call.1} parent=1 // pred_region
      _
    $region29: #{tpu_custom_call.1} parent=1 // pred_fallthru
      _
    %v27 = vld [vmem:[%s0] sm:$0xff]
    %v28 = vld [vmem:[%s0 + $0x8] sm:$0xff]
    %v29 = vld [vmem:[%s0 + $0x10] sm:$0xff]
    %v30 = vld [vmem:[%s0 + $0x18] sm:$0xff]
    %v31 = vld [vmem:[%s1] sm:$0xff]
    %v32 = vld [vmem:[%s1 + $0x8] sm:$0xff]
    %v33 = vld [vmem:[%s1 + $0x10] sm:$0xff]
    %v34 = vld [vmem:[%s1 + $0x18] sm:$0xff]
    %v35 = vld [vmem:[%s1 + $0x20] sm:$0xff]
    %v36 = vld [vmem:[%s1 + $0x28] sm:$0xff]
    %v37 = vld [vmem:[%s1 + $0x30] sm:$0xff]
    %v38 = vld [vmem:[%s1 + $0x38] sm:$0xff]
    %v39 = vld [vmem:[%s1 + $0x40] sm:$0xff]
    %v40 = vld [vmem:[%s1 + $0x48] sm:$0xff]
    %v41 = vld [vmem:[%s1 + $0x50] sm:$0xff]
    %v42 = vld [vmem:[%s1 + $0x58] sm:$0xff]
    %v43 = vld [vmem:[%s2] sm:$0xff]
    %v44 = vld [vmem:[%s2 + $0x8] sm:$0xff]
    %v45 = vld [vmem:[%s2 + $0x10] sm:$0xff]
    %v46 = vld [vmem:[%s2 + $0x18] sm:$0xff]
    %v47 = vld [vmem:[%s2 + $0x20] sm:$0xff]
    %v48 = vld [vmem:[%s2 + $0x28] sm:$0xff]
    %v49 = vld [vmem:[%s2 + $0x30] sm:$0xff]
    %v50 = vld [vmem:[%s2 + $0x38] sm:$0xff]
    %v51 = vld [vmem:[%s2 + $0x40] sm:$0xff]
    %v52 = vld [vmem:[%s2 + $0x48] sm:$0xff]
    %v53 = vld [vmem:[%s2 + $0x50] sm:$0xff]
    %v54 = vld [vmem:[%s2 + $0x58] sm:$0xff]
    %56 = vset.pattern.permute.xlu0 0
    %57 = vperm.xlu0 %56, %v43
    %v58 = vpop.permute.xlu0 %57
    %61 = vset.pattern.permute.xlu0 0
    %62 = vperm.xlu0 %61, %v44
    %v63 = vpop.permute.xlu0 %62
    %66 = vset.pattern.permute.xlu0 0
    %67 = vperm.xlu0 %66, %v45
    %v68 = vpop.permute.xlu0 %67
    %71 = vset.pattern.permute.xlu0 0
    %72 = vperm.xlu0 %71, %v46
    %v73 = vpop.permute.xlu0 %72
    %76 = vset.pattern.permute.xlu0 0
    %77 = vperm.xlu0 %76, %v47
    %v78 = vpop.permute.xlu0 %77
    %81 = vset.pattern.permute.xlu0 0
    %82 = vperm.xlu0 %81, %v48
    %v83 = vpop.permute.xlu0 %82
    %86 = vset.pattern.permute.xlu0 0
    %87 = vperm.xlu0 %86, %v49
    %v88 = vpop.permute.xlu0 %87
    %91 = vset.pattern.permute.xlu0 0
    %92 = vperm.xlu0 %91, %v50
    %v93 = vpop.permute.xlu0 %92
    %96 = vset.pattern.permute.xlu0 0
    %97 = vperm.xlu0 %96, %v51
    %v98 = vpop.permute.xlu0 %97
    %101 = vset.pattern.permute.xlu0 0
    %102 = vperm.xlu0 %101, %v52
    %v103 = vpop.permute.xlu0 %102
    %106 = vset.pattern.permute.xlu0 0
    %107 = vperm.xlu0 %106, %v53
    %v108 = vpop.permute.xlu0 %107
    %111 = vset.pattern.permute.xlu0 0
    %112 = vperm.xlu0 %111, %v54
    %v113 = vpop.permute.xlu0 %112
    %vm115 = vcmask 261120
    %v117 = vsel %vm115, %v31, 0
    %v120 = vsel %vm115, %v32, 0
    %v123 = vsel %vm115, %v33, 0
    %v126 = vsel %vm115, %v34, 0
    %v129 = vsel %vm115, %v35, 0
    %v132 = vsel %vm115, %v36, 0
    %v135 = vsel %vm115, %v37, 0
    %v138 = vsel %vm115, %v38, 0
    %v141 = vsel %vm115, %v39, 0
    %v144 = vsel %vm115, %v40, 0
    %v147 = vsel %vm115, %v41, 0
    %v150 = vsel %vm115, %v42, 0
    %152 = vmatpush.msra.mxu0 0.0
    %153 = vmatpush.msra.mxu0 0.0
    %154 = vmatpush.msra.mxu0 0.0
    %155 = vmatpush.msra.mxu0 0.0
    %156 = vmatpush.msra.mxu0 0.0
    %157 = vmatpush.msra.mxu0 0.0
    %158 = vmatpush.msra.mxu0 0.0
    %159 = vmatpush.msra.mxu0 0.0
    %160 = vmatpush.msra.mxu0 0.0
    %161 = vmatpush.msra.mxu0 0.0
    %162 = vmatpush.msra.mxu0 0.0
    %163 = vmatpush.msra.mxu0 0.0
    %164 = vmatpush.msra.mxu0 %v30
    %165 = vmatpush.msra.mxu0 %v29
    %166 = vmatpush.msra.mxu0 %v28
    %167 = vmatpush.msra.mxu0 %v27
    %168 = vmatmul.f32.gmra.mxu0 %v117
    %v169 = vpop.f32.mrf.mxu0
    %v170 = vadd.f32 %v58, %v169
    %171 = vmatmul.f32.gmra.mxu0 %v120
    %v172 = vpop.f32.mrf.mxu0
    %v173 = vadd.f32 %v63, %v172
    %174 = vmatmul.f32.gmra.mxu0 %v123
    %v175 = vpop.f32.mrf.mxu0
    %v176 = vadd.f32 %v68, %v175
    %177 = vmatmul.f32.gmra.mxu0 %v126
    %v178 = vpop.f32.mrf.mxu0
    %v179 = vadd.f32 %v73, %v178
    %180 = vmatmul.f32.gmra.mxu0 %v129
    %v181 = vpop.f32.mrf.mxu0
    %v182 = vadd.f32 %v78, %v181
    %183 = vmatmul.f32.gmra.mxu0 %v132
    %v184 = vpop.f32.mrf.mxu0
    %v185 = vadd.f32 %v83, %v184
    %186 = vmatmul.f32.gmra.mxu0 %v135
    %v187 = vpop.f32.mrf.mxu0
    %v188 = vadd.f32 %v88, %v187
    %189 = vmatmul.f32.gmra.mxu0 %v138
    %v190 = vpop.f32.mrf.mxu0
    %v191 = vadd.f32 %v93, %v190
    %192 = vmatmul.f32.gmra.mxu0 %v141
    %v193 = vpop.f32.mrf.mxu0
    %v194 = vadd.f32 %v98, %v193
    %195 = vmatmul.f32.gmra.mxu0 %v144
    %v196 = vpop.f32.mrf.mxu0
    %v197 = vadd.f32 %v103, %v196
    %198 = vmatmul.f32.gmra.mxu0 %v147
    %v199 = vpop.f32.mrf.mxu0
    %v200 = vadd.f32 %v108, %v199
    %201 = vmatmul.f32.gmra.mxu0 %v150
    %v202 = vpop.f32.mrf.mxu0
    %v203 = vadd.f32 %v113, %v202
    %204 = vdwg.mxu0
    %v205 = vld [vmem:[%s5] sm:$0xff]
    %v206 = vld [vmem:[%s5 + $0x8] sm:$0xff]
    %v207 = vld [vmem:[%s5 + $0x10] sm:$0xff]
    %v208 = vld [vmem:[%s5 + $0x18] sm:$0xff]
    %v209 = vld [vmem:[%s6] sm:$0xff]
    %v210 = vld [vmem:[%s6 + $0x8] sm:$0xff]
    %v211 = vld [vmem:[%s6 + $0x10] sm:$0xff]
    %v212 = vld [vmem:[%s6 + $0x18] sm:$0xff]
    %213 = vxpose.xlu0.b32.start [1/16] %v170, 128
    %214 = vxpose.xlu0.b32.cont [2/16] 0.0, 128
    %215 = vxpose.xlu0.b32.cont [3/16] 0.0, 128
    %216 = vxpose.xlu0.b32.cont [4/16] 0.0, 128
    %217 = vxpose.xlu0.b32.cont [5/16] 0.0, 128
    %218 = vxpose.xlu0.b32.cont [6/16] 0.0, 128
    %219 = vxpose.xlu0.b32.cont [7/16] 0.0, 128
    %220 = vxpose.xlu0.b32.cont [8/16] 0.0, 128
    %221 = vxpose.xlu0.b32.cont [9/16] 0.0, 128
    %222 = vxpose.xlu0.b32.cont [10/16] 0.0, 128
    %223 = vxpose.xlu0.b32.cont [11/16] 0.0, 128
    %224 = vxpose.xlu0.b32.cont [12/16] 0.0, 128
    %225 = vxpose.xlu0.b32.cont [13/16] 0.0, 128
    %226 = vxpose.xlu0.b32.cont [14/16] 0.0, 128
    %227 = vxpose.xlu0.b32.cont [15/16] 0.0, 128
    %228 = vxpose.xlu0.b32.end [16/16] 0.0, 128
    %v229 = vpop.trf.xlu0
    %v230 = vpop.trf.xlu0
    %v231 = vpop.trf.xlu0
    %v232 = vpop.trf.xlu0
    %v233 = vpop.trf.xlu0
    %v234 = vpop.trf.xlu0
    %v235 = vpop.trf.xlu0
    %v236 = vpop.trf.xlu0
    %v237 = vpop.trf.xlu0
    %v238 = vpop.trf.xlu0
    %v239 = vpop.trf.xlu0
    %v240 = vpop.trf.xlu0
    %v241 = vpop.trf.xlu0
    %v242 = vpop.trf.xlu0
    %v243 = vpop.trf.xlu0
    %v244 = vpop.trf.xlu0
    %245 = vxpose.xlu0.b32.start [1/16] %v173, 128
    %246 = vxpose.xlu0.b32.cont [2/16] 0.0, 128
    %247 = vxpose.xlu0.b32.cont [3/16] 0.0, 128
    %248 = vxpose.xlu0.b32.cont [4/16] 0.0, 128
    %249 = vxpose.xlu0.b32.cont [5/16] 0.0, 128
    %250 = vxpose.xlu0.b32.cont [6/16] 0.0, 128
    %251 = vxpose.xlu0.b32.cont [7/16] 0.0, 128
    %252 = vxpose.xlu0.b32.cont [8/16] 0.0, 128
    %253 = vxpose.xlu0.b32.cont [9/16] 0.0, 128
    %254 = vxpose.xlu0.b32.cont [10/16] 0.0, 128
    %255 = vxpose.xlu0.b32.cont [11/16] 0.0, 128
    %256 = vxpose.xlu0.b32.cont [12/16] 0.0, 128
    %257 = vxpose.xlu0.b32.cont [13/16] 0.0, 128
    %258 = vxpose.xlu0.b32.cont [14/16] 0.0, 128
    %259 = vxpose.xlu0.b32.cont [15/16] 0.0, 128
    %260 = vxpose.xlu0.b32.end [16/16] 0.0, 128
    %v261 = vpop.trf.xlu0
    %v262 = vpop.trf.xlu0
    %v263 = vpop.trf.xlu0
    %v264 = vpop.trf.xlu0
    %v265 = vpop.trf.xlu0
    %v266 = vpop.trf.xlu0
    %v267 = vpop.trf.xlu0
    %v268 = vpop.trf.xlu0
    %v269 = vpop.trf.xlu0
    %v270 = vpop.trf.xlu0
    %v271 = vpop.trf.xlu0
    %v272 = vpop.trf.xlu0
    %v273 = vpop.trf.xlu0
    %v274 = vpop.trf.xlu0
    %v275 = vpop.trf.xlu0
    %v276 = vpop.trf.xlu0
    %277 = vxpose.xlu0.b32.start [1/16] %v176, 128
    %278 = vxpose.xlu0.b32.cont [2/16] 0.0, 128
    %279 = vxpose.xlu0.b32.cont [3/16] 0.0, 128
    %280 = vxpose.xlu0.b32.cont [4/16] 0.0, 128
    %281 = vxpose.xlu0.b32.cont [5/16] 0.0, 128
    %282 = vxpose.xlu0.b32.cont [6/16] 0.0, 128
    %283 = vxpose.xlu0.b32.cont [7/16] 0.0, 128
    %284 = vxpose.xlu0.b32.cont [8/16] 0.0, 128
    %285 = vxpose.xlu0.b32.cont [9/16] 0.0, 128
    %286 = vxpose.xlu0.b32.cont [10/16] 0.0, 128
    %287 = vxpose.xlu0.b32.cont [11/16] 0.0, 128
    %288 = vxpose.xlu0.b32.cont [12/16] 0.0, 128
    %289 = vxpose.xlu0.b32.cont [13/16] 0.0, 128
    %290 = vxpose.xlu0.b32.cont [14/16] 0.0, 128
    %291 = vxpose.xlu0.b32.cont [15/16] 0.0, 128
    %292 = vxpose.xlu0.b32.end [16/16] 0.0, 128
    %v293 = vpop.trf.xlu0
    %v294 = vpop.trf.xlu0
    %v295 = vpop.trf.xlu0
    %v296 = vpop.trf.xlu0
    %v297 = vpop.trf.xlu0
    %v298 = vpop.trf.xlu0
    %v299 = vpop.trf.xlu0
    %v300 = vpop.trf.xlu0
    %v301 = vpop.trf.xlu0
    %v302 = vpop.trf.xlu0
    %v303 = vpop.trf.xlu0
    %v304 = vpop.trf.xlu0
    %v305 = vpop.trf.xlu0
    %v306 = vpop.trf.xlu0
    %v307 = vpop.trf.xlu0
    %v308 = vpop.trf.xlu0
    %309 = vxpose.xlu0.b32.start [1/16] %v179, 128
    %310 = vxpose.xlu0.b32.cont [2/16] 0.0, 128
    %311 = vxpose.xlu0.b32.cont [3/16] 0.0, 128
    %312 = vxpose.xlu0.b32.cont [4/16] 0.0, 128
    %313 = vxpose.xlu0.b32.cont [5/16] 0.0, 128
    %314 = vxpose.xlu0.b32.cont [6/16] 0.0, 128
    %315 = vxpose.xlu0.b32.cont [7/16] 0.0, 128
    %316 = vxpose.xlu0.b32.cont [8/16] 0.0, 128
    %317 = vxpose.xlu0.b32.cont [9/16] 0.0, 128
    %318 = vxpose.xlu0.b32.cont [10/16] 0.0, 128
    %319 = vxpose.xlu0.b32.cont [11/16] 0.0, 128
    %320 = vxpose.xlu0.b32.cont [12/16] 0.0, 128
    %321 = vxpose.xlu0.b32.cont [13/16] 0.0, 128
    %322 = vxpose.xlu0.b32.cont [14/16] 0.0, 128
    %323 = vxpose.xlu0.b32.cont [15/16] 0.0, 128
    %324 = vxpose.xlu0.b32.end [16/16] 0.0, 128
    %v325 = vpop.trf.xlu0
    %v326 = vpop.trf.xlu0
    %v327 = vpop.trf.xlu0
    %v328 = vpop.trf.xlu0
    %v329 = vpop.trf.xlu0
    %v330 = vpop.trf.xlu0
    %v331 = vpop.trf.xlu0
    %v332 = vpop.trf.xlu0
    %v333 = vpop.trf.xlu0
    %v334 = vpop.trf.xlu0
    %v335 = vpop.trf.xlu0
    %v336 = vpop.trf.xlu0
    %v337 = vpop.trf.xlu0
    %v338 = vpop.trf.xlu0
    %v339 = vpop.trf.xlu0
    %v340 = vpop.trf.xlu0
    %vm341 = vcmask 64512
    %v343 = vsel %vm341, %v229, 0
    %v346 = vsel %vm341, %v230, 0
    %348 = vmatpush.msra.mxu0 0.0
    %349 = vmatpush.msra.mxu0 0.0
    %350 = vmatpush.msra.mxu0 0.0
    %351 = vmatpush.msra.mxu0 0.0
    %352 = vmatpush.msra.mxu0 0.0
    %353 = vmatpush.msra.mxu0 0.0
    %354 = vmatpush.msra.mxu0 0.0
    %355 = vmatpush.msra.mxu0 0.0
    %356 = vmatpush.msra.mxu0 0.0
    %357 = vmatpush.msra.mxu0 0.0
    %358 = vmatpush.msra.mxu0 0.0
    %359 = vmatpush.msra.mxu0 0.0
    %360 = vmatpush.msra.mxu0 0.0
    %361 = vmatpush.msra.mxu0 0.0
    %362 = vmatpush.msra.mxu0 0.0
    %363 = vmatpush.msra.mxu0 %v182
    %364 = vmatmul.f32.gmra.mxu0 %v343
    %v365 = vpop.f32.mrf.mxu0
    %v366 = vadd.f32 0.0, %v365
    %367 = vmatmul.f32.gmra.mxu0 %v346
    %v368 = vpop.f32.mrf.mxu0
    %v369 = vadd.f32 0.0, %v368
    %370 = vdwg.mxu0
    %v372 = vsel %vm341, %v261, 0
    %v375 = vsel %vm341, %v262, 0
    %377 = vmatpush.msra.mxu0 0.0
    %378 = vmatpush.msra.mxu0 0.0
    %379 = vmatpush.msra.mxu0 0.0
    %380 = vmatpush.msra.mxu0 0.0
    %381 = vmatpush.msra.mxu0 0.0
    %382 = vmatpush.msra.mxu0 0.0
    %383 = vmatpush.msra.mxu0 0.0
    %384 = vmatpush.msra.mxu0 0.0
    %385 = vmatpush.msra.mxu0 0.0
    %386 = vmatpush.msra.mxu0 0.0
    %387 = vmatpush.msra.mxu0 0.0
    %388 = vmatpush.msra.mxu0 0.0
    %389 = vmatpush.msra.mxu0 0.0
    %390 = vmatpush.msra.mxu0 0.0
    %391 = vmatpush.msra.mxu0 0.0
    %392 = vmatpush.msra.mxu0 %v185
    %393 = vmatmul.f32.gmra.mxu0 %v372
    %v394 = vpop.f32.mrf.mxu0
    %v395 = vadd.f32 0.0, %v394
    %396 = vmatmul.f32.gmra.mxu0 %v375
    %v397 = vpop.f32.mrf.mxu0
    %v398 = vadd.f32 0.0, %v397
    %399 = vdwg.mxu0
    %v401 = vsel %vm341, %v293, 0
    %v404 = vsel %vm341, %v294, 0
    %406 = vmatpush.msra.mxu0 0.0
    %407 = vmatpush.msra.mxu0 0.0
    %408 = vmatpush.msra.mxu0 0.0
    %409 = vmatpush.msra.mxu0 0.0
    %410 = vmatpush.msra.mxu0 0.0
    %411 = vmatpush.msra.mxu0 0.0
    %412 = vmatpush.msra.mxu0 0.0
    %413 = vmatpush.msra.mxu0 0.0
    %414 = vmatpush.msra.mxu0 0.0
    %415 = vmatpush.msra.mxu0 0.0
    %416 = vmatpush.msra.mxu0 0.0
    %417 = vmatpush.msra.mxu0 0.0
    %418 = vmatpush.msra.mxu0 0.0
    %419 = vmatpush.msra.mxu0 0.0
    %420 = vmatpush.msra.mxu0 0.0
    %421 = vmatpush.msra.mxu0 %v188
    %422 = vmatmul.f32.gmra.mxu0 %v401
    %v423 = vpop.f32.mrf.mxu0
    %v424 = vadd.f32 0.0, %v423
    %425 = vmatmul.f32.gmra.mxu0 %v404
    %v426 = vpop.f32.mrf.mxu0
    %v427 = vadd.f32 0.0, %v426
    %428 = vdwg.mxu0
    %v430 = vsel %vm341, %v325, 0
    %v433 = vsel %vm341, %v326, 0
    %435 = vmatpush.msra.mxu0 0.0
    %436 = vmatpush.msra.mxu0 0.0
    %437 = vmatpush.msra.mxu0 0.0
    %438 = vmatpush.msra.mxu0 0.0
    %439 = vmatpush.msra.mxu0 0.0
    %440 = vmatpush.msra.mxu0 0.0
    %441 = vmatpush.msra.mxu0 0.0
    %442 = vmatpush.msra.mxu0 0.0
    %443 = vmatpush.msra.mxu0 0.0
    %444 = vmatpush.msra.mxu0 0.0
    %445 = vmatpush.msra.mxu0 0.0
    %446 = vmatpush.msra.mxu0 0.0
    %447 = vmatpush.msra.mxu0 0.0
    %448 = vmatpush.msra.mxu0 0.0
    %449 = vmatpush.msra.mxu0 0.0
    %450 = vmatpush.msra.mxu0 %v191
    %451 = vmatmul.f32.gmra.mxu0 %v430
    %v452 = vpop.f32.mrf.mxu0
    %v453 = vadd.f32 0.0, %v452
    %454 = vmatmul.f32.gmra.mxu0 %v433
    %v455 = vpop.f32.mrf.mxu0
    %v456 = vadd.f32 0.0, %v455
    %457 = vdwg.mxu0
    %458 = vmatpush.msra.mxu0 0.0
    %459 = vmatpush.msra.mxu0 0.0
    %460 = vmatpush.msra.mxu0 0.0
    %461 = vmatpush.msra.mxu0 0.0
    %462 = vmatpush.msra.mxu0 0.0
    %463 = vmatpush.msra.mxu0 0.0
    %464 = vmatpush.msra.mxu0 0.0
    %465 = vmatpush.msra.mxu0 0.0
    %466 = vmatpush.msra.mxu0 0.0
    %467 = vmatpush.msra.mxu0 0.0
    %468 = vmatpush.msra.mxu0 0.0
    %469 = vmatpush.msra.mxu0 0.0
    %470 = vmatpush.msra.mxu0 0.0
    %471 = vmatpush.msra.mxu0 0.0
    %472 = vmatpush.msra.mxu0 0.0
    %473 = vmatpush.msra.mxu0 %v205
    %474 = vmatmul.f32.gmra.mxu0 %v343
    %v475 = vpop.f32.mrf.mxu0
    %v476 = vadd.f32 0.0, %v475
    %477 = vmatmul.f32.gmra.mxu0 %v346
    %v478 = vpop.f32.mrf.mxu0
    %v479 = vadd.f32 0.0, %v478
    %480 = vdwg.mxu0
    %481 = vmatpush.msra.mxu0 0.0
    %482 = vmatpush.msra.mxu0 0.0
    %483 = vmatpush.msra.mxu0 0.0
    %484 = vmatpush.msra.mxu0 0.0
    %485 = vmatpush.msra.mxu0 0.0
    %486 = vmatpush.msra.mxu0 0.0
    %487 = vmatpush.msra.mxu0 0.0
    %488 = vmatpush.msra.mxu0 0.0
    %489 = vmatpush.msra.mxu0 0.0
    %490 = vmatpush.msra.mxu0 0.0
    %491 = vmatpush.msra.mxu0 0.0
    %492 = vmatpush.msra.mxu0 0.0
    %493 = vmatpush.msra.mxu0 0.0
    %494 = vmatpush.msra.mxu0 0.0
    %495 = vmatpush.msra.mxu0 0.0
    %496 = vmatpush.msra.mxu0 %v206
    %497 = vmatmul.f32.gmra.mxu0 %v372
    %v498 = vpop.f32.mrf.mxu0
    %v499 = vadd.f32 0.0, %v498
    %500 = vmatmul.f32.gmra.mxu0 %v375
    %v501 = vpop.f32.mrf.mxu0
    %v502 = vadd.f32 0.0, %v501
    %503 = vdwg.mxu0
    %504 = vmatpush.msra.mxu0 0.0
    %505 = vmatpush.msra.mxu0 0.0
    %506 = vmatpush.msra.mxu0 0.0
    %507 = vmatpush.msra.mxu0 0.0
    %508 = vmatpush.msra.mxu0 0.0
    %509 = vmatpush.msra.mxu0 0.0
    %510 = vmatpush.msra.mxu0 0.0
    %511 = vmatpush.msra.mxu0 0.0
    %512 = vmatpush.msra.mxu0 0.0
    %513 = vmatpush.msra.mxu0 0.0
    %514 = vmatpush.msra.mxu0 0.0
    %515 = vmatpush.msra.mxu0 0.0
    %516 = vmatpush.msra.mxu0 0.0
    %517 = vmatpush.msra.mxu0 0.0
    %518 = vmatpush.msra.mxu0 0.0
    %519 = vmatpush.msra.mxu0 %v207
    %520 = vmatmul.f32.gmra.mxu0 %v401
    %v521 = vpop.f32.mrf.mxu0
    %v522 = vadd.f32 0.0, %v521
    %523 = vmatmul.f32.gmra.mxu0 %v404
    %v524 = vpop.f32.mrf.mxu0
    %v525 = vadd.f32 0.0, %v524
    %526 = vdwg.mxu0
    %527 = vmatpush.msra.mxu0 0.0
    %528 = vmatpush.msra.mxu0 0.0
    %529 = vmatpush.msra.mxu0 0.0
    %530 = vmatpush.msra.mxu0 0.0
    %531 = vmatpush.msra.mxu0 0.0
    %532 = vmatpush.msra.mxu0 0.0
    %533 = vmatpush.msra.mxu0 0.0
    %534 = vmatpush.msra.mxu0 0.0
    %535 = vmatpush.msra.mxu0 0.0
    %536 = vmatpush.msra.mxu0 0.0
    %537 = vmatpush.msra.mxu0 0.0
    %538 = vmatpush.msra.mxu0 0.0
    %539 = vmatpush.msra.mxu0 0.0
    %540 = vmatpush.msra.mxu0 0.0
    %541 = vmatpush.msra.mxu0 0.0
    %542 = vmatpush.msra.mxu0 %v208
    %543 = vmatmul.f32.gmra.mxu0 %v430
    %v544 = vpop.f32.mrf.mxu0
    %v545 = vadd.f32 0.0, %v544
    %546 = vmatmul.f32.gmra.mxu0 %v433
    %v547 = vpop.f32.mrf.mxu0
    %v548 = vadd.f32 0.0, %v547
    %549 = vdwg.mxu0
    %vm550 = vcmask 130048
    %v551 = vsel %vm550, %v366, -inf
    %552 = vmax.xlane.f32.xlu0 %v551
    %v553 = vpop.xlane.xlu0 %552
    %v554 = vsel %vm550, %v369, -inf
    %555 = vmax.xlane.f32.xlu0 %v554
    %v556 = vpop.xlane.xlu0 %555
    %v557 = vsel %vm550, %v395, -inf
    %558 = vmax.xlane.f32.xlu0 %v557
    %v559 = vpop.xlane.xlu0 %558
    %v560 = vsel %vm550, %v398, -inf
    %561 = vmax.xlane.f32.xlu0 %v560
    %v562 = vpop.xlane.xlu0 %561
    %v563 = vsel %vm550, %v424, -inf
    %564 = vmax.xlane.f32.xlu0 %v563
    %v565 = vpop.xlane.xlu0 %564
    %v566 = vsel %vm550, %v427, -inf
    %567 = vmax.xlane.f32.xlu0 %v566
    %v568 = vpop.xlane.xlu0 %567
    %v569 = vsel %vm550, %v453, -inf
    %570 = vmax.xlane.f32.xlu0 %v569
    %v571 = vpop.xlane.xlu0 %570
    %v572 = vsel %vm550, %v456, -inf
    %573 = vmax.xlane.f32.xlu0 %v572
    %v574 = vpop.xlane.xlu0 %573
    %v575 = vsel %vm341, %v476, -inf
    %576 = vmax.xlane.f32.xlu0 %v575
    %v577 = vpop.xlane.xlu0 %576
    %v578 = vsel %vm341, %v479, -inf
    %579 = vmax.xlane.f32.xlu0 %v578
    %v580 = vpop.xlane.xlu0 %579
    %v581 = vsel %vm341, %v499, -inf
    %582 = vmax.xlane.f32.xlu0 %v581
    %v583 = vpop.xlane.xlu0 %582
    %v584 = vsel %vm341, %v502, -inf
    %585 = vmax.xlane.f32.xlu0 %v584
    %v586 = vpop.xlane.xlu0 %585
    %v587 = vsel %vm341, %v522, -inf
    %588 = vmax.xlane.f32.xlu0 %v587
    %v589 = vpop.xlane.xlu0 %588
    %v590 = vsel %vm341, %v525, -inf
    %591 = vmax.xlane.f32.xlu0 %v590
    %v592 = vpop.xlane.xlu0 %591
    %v593 = vsel %vm341, %v545, -inf
    %594 = vmax.xlane.f32.xlu0 %v593
    %v595 = vpop.xlane.xlu0 %594
    %v596 = vsel %vm341, %v548, -inf
    %597 = vmax.xlane.f32.xlu0 %v596
    %v598 = vpop.xlane.xlu0 %597
    %v599 = vmax.f32 %v553, %v577
    %v600 = vmax.f32 %v556, %v580
    %v601 = vmax.f32 %v559, %v583
    %v602 = vmax.f32 %v562, %v586
    %v603 = vmax.f32 %v565, %v589
    %v604 = vmax.f32 %v568, %v592
    %v605 = vmax.f32 %v571, %v595
    %v606 = vmax.f32 %v574, %v598
    %v607 = vsub.f32 %v366, %v599
    %v608 = vsub.f32 %v369, %v600
    %v609 = vsub.f32 %v395, %v601
    %v610 = vsub.f32 %v398, %v602
    %v611 = vsub.f32 %v424, %v603
    %v612 = vsub.f32 %v427, %v604
    %v613 = vsub.f32 %v453, %v605
    %v614 = vsub.f32 %v456, %v606
    %v615 = vmul.f32 %v607, 1.442695
    %v616 = vpow.pop %v615
    %v617 = vmul.f32 %v608, 1.442695
    %v618 = vpow.pop %v617
    %v619 = vmul.f32 %v609, 1.442695
    %v620 = vpow.pop %v619
    %v621 = vmul.f32 %v610, 1.442695
    %v622 = vpow.pop %v621
    %v623 = vmul.f32 %v611, 1.442695
    %v624 = vpow.pop %v623
    %v625 = vmul.f32 %v612, 1.442695
    %v626 = vpow.pop %v625
    %v627 = vmul.f32 %v613, 1.442695
    %v628 = vpow.pop %v627
    %v629 = vmul.f32 %v614, 1.442695
    %v630 = vpow.pop %v629
    %v631 = vsub.f32 %v476, %v599
    %v632 = vsub.f32 %v479, %v600
    %v633 = vsub.f32 %v499, %v601
    %v634 = vsub.f32 %v502, %v602
    %v635 = vsub.f32 %v522, %v603
    %v636 = vsub.f32 %v525, %v604
    %v637 = vsub.f32 %v545, %v605
    %v638 = vsub.f32 %v548, %v606
    %v639 = vmul.f32 %v631, 1.442695
    %v640 = vpow.pop %v639
    %v641 = vmul.f32 %v632, 1.442695
    %v642 = vpow.pop %v641
    %v643 = vmul.f32 %v633, 1.442695
    %v644 = vpow.pop %v643
    %v645 = vmul.f32 %v634, 1.442695
    %v646 = vpow.pop %v645
    %v647 = vmul.f32 %v635, 1.442695
    %v648 = vpow.pop %v647
    %v649 = vmul.f32 %v636, 1.442695
    %v650 = vpow.pop %v649
    %v651 = vmul.f32 %v637, 1.442695
    %v652 = vpow.pop %v651
    %v653 = vmul.f32 %v638, 1.442695
    %v654 = vpow.pop %v653
    %v655 = vsel %vm550, %v616, 0.0
    %656 = vadd.xlane.f32.xlu0 %v655
    %v657 = vpop.xlane.xlu0 %656
    %v658 = vsel %vm550, %v618, 0.0
    %659 = vadd.xlane.f32.xlu0 %v658
    %v660 = vpop.xlane.xlu0 %659
    %v661 = vsel %vm550, %v620, 0.0
    %662 = vadd.xlane.f32.xlu0 %v661
    %v663 = vpop.xlane.xlu0 %662
    %v664 = vsel %vm550, %v622, 0.0
    %665 = vadd.xlane.f32.xlu0 %v664
    %v666 = vpop.xlane.xlu0 %665
    %v667 = vsel %vm550, %v624, 0.0
    %668 = vadd.xlane.f32.xlu0 %v667
    %v669 = vpop.xlane.xlu0 %668
    %v670 = vsel %vm550, %v626, 0.0
    %671 = vadd.xlane.f32.xlu0 %v670
    %v672 = vpop.xlane.xlu0 %671
    %v673 = vsel %vm550, %v628, 0.0
    %674 = vadd.xlane.f32.xlu0 %v673
    %v675 = vpop.xlane.xlu0 %674
    %v676 = vsel %vm550, %v630, 0.0
    %677 = vadd.xlane.f32.xlu0 %v676
    %v678 = vpop.xlane.xlu0 %677
    %v679 = vsel %vm341, %v640, 0.0
    %680 = vadd.xlane.f32.xlu0 %v679
    %v681 = vpop.xlane.xlu0 %680
    %v682 = vsel %vm341, %v642, 0.0
    %683 = vadd.xlane.f32.xlu0 %v682
    %v684 = vpop.xlane.xlu0 %683
    %v685 = vsel %vm341, %v644, 0.0
    %686 = vadd.xlane.f32.xlu0 %v685
    %v687 = vpop.xlane.xlu0 %686
    %v688 = vsel %vm341, %v646, 0.0
    %689 = vadd.xlane.f32.xlu0 %v688
    %v690 = vpop.xlane.xlu0 %689
    %v691 = vsel %vm341, %v648, 0.0
    %692 = vadd.xlane.f32.xlu0 %v691
    %v693 = vpop.xlane.xlu0 %692
    %v694 = vsel %vm341, %v650, 0.0
    %695 = vadd.xlane.f32.xlu0 %v694
    %v696 = vpop.xlane.xlu0 %695
    %v697 = vsel %vm341, %v652, 0.0
    %698 = vadd.xlane.f32.xlu0 %v697
    %v699 = vpop.xlane.xlu0 %698
    %v700 = vsel %vm341, %v654, 0.0
    %701 = vadd.xlane.f32.xlu0 %v700
    %v702 = vpop.xlane.xlu0 %701
    %v703 = vadd.f32 %v657, %v681
    %v704 = vadd.f32 %v660, %v684
    %v705 = vadd.f32 %v663, %v687
    %v706 = vadd.f32 %v666, %v690
    %v707 = vadd.f32 %v669, %v693
    %v708 = vadd.f32 %v672, %v696
    %v709 = vadd.f32 %v675, %v699
    %v710 = vadd.f32 %v678, %v702
    %v711 = vrcp.pop %v703
    %v712 = vmul.f32 %v703, %v711
    %v713 = vsub.f32 1.0, %v712
    %v714 = vmul.f32 %v711, %v713
    %v715 = vadd.f32 %v711, %v714
    %vm716 = vweird.f32 %v703
    %vm717 = vweird.f32 %v711
    %vm718 = vmor %vm716, %vm717
    %v719 = vsel %vm718, %v711, %v715
    %v720 = vand.u32 2147483647, %v703
    %vm721 = vcmp.eq.f32.partialorder %v720, 8.507059e+37
    %v722 = vand.u32 %v703, 2147483648
    %v723 = vor.u32 1.1754944e-38, %v722
    %v724 = vsel %vm721, %v723, %v719
    %v725 = vrcp.pop %v704
    %v726 = vmul.f32 %v704, %v725
    %v727 = vsub.f32 1.0, %v726
    %v728 = vmul.f32 %v725, %v727
    %v729 = vadd.f32 %v725, %v728
    %vm730 = vweird.f32 %v704
    %vm731 = vweird.f32 %v725
    %vm732 = vmor %vm730, %vm731
    %v733 = vsel %vm732, %v725, %v729
    %v734 = vand.u32 2147483647, %v704
    %vm735 = vcmp.eq.f32.partialorder %v734, 8.507059e+37
    %v736 = vand.u32 %v704, 2147483648
    %v737 = vor.u32 1.1754944e-38, %v736
    %v738 = vsel %vm735, %v737, %v733
    %v739 = vrcp.pop %v705
    %v740 = vmul.f32 %v705, %v739
    %v741 = vsub.f32 1.0, %v740
    %v742 = vmul.f32 %v739, %v741
    %v743 = vadd.f32 %v739, %v742
    %vm744 = vweird.f32 %v705
    %vm745 = vweird.f32 %v739
    %vm746 = vmor %vm744, %vm745
    %v747 = vsel %vm746, %v739, %v743
    %v748 = vand.u32 2147483647, %v705
    %vm749 = vcmp.eq.f32.partialorder %v748, 8.507059e+37
    %v750 = vand.u32 %v705, 2147483648
    %v751 = vor.u32 1.1754944e-38, %v750
    %v752 = vsel %vm749, %v751, %v747
    %v753 = vrcp.pop %v706
    %v754 = vmul.f32 %v706, %v753
    %v755 = vsub.f32 1.0, %v754
    %v756 = vmul.f32 %v753, %v755
    %v757 = vadd.f32 %v753, %v756
    %vm758 = vweird.f32 %v706
    %vm759 = vweird.f32 %v753
    %vm760 = vmor %vm758, %vm759
    %v761 = vsel %vm760, %v753, %v757
    %v762 = vand.u32 2147483647, %v706
    %vm763 = vcmp.eq.f32.partialorder %v762, 8.507059e+37
    %v764 = vand.u32 %v706, 2147483648
    %v765 = vor.u32 1.1754944e-38, %v764
    %v766 = vsel %vm763, %v765, %v761
    %v767 = vrcp.pop %v707
    %v768 = vmul.f32 %v707, %v767
    %v769 = vsub.f32 1.0, %v768
    %v770 = vmul.f32 %v767, %v769
    %v771 = vadd.f32 %v767, %v770
    %vm772 = vweird.f32 %v707
    %vm773 = vweird.f32 %v767
    %vm774 = vmor %vm772, %vm773
    %v775 = vsel %vm774, %v767, %v771
    %v776 = vand.u32 2147483647, %v707
    %vm777 = vcmp.eq.f32.partialorder %v776, 8.507059e+37
    %v778 = vand.u32 %v707, 2147483648
    %v779 = vor.u32 1.1754944e-38, %v778
    %v780 = vsel %vm777, %v779, %v775
    %v781 = vrcp.pop %v708
    %v782 = vmul.f32 %v708, %v781
    %v783 = vsub.f32 1.0, %v782
    %v784 = vmul.f32 %v781, %v783
    %v785 = vadd.f32 %v781, %v784
    %vm786 = vweird.f32 %v708
    %vm787 = vweird.f32 %v781
    %vm788 = vmor %vm786, %vm787
    %v789 = vsel %vm788, %v781, %v785
    %v790 = vand.u32 2147483647, %v708
    %vm791 = vcmp.eq.f32.partialorder %v790, 8.507059e+37
    %v792 = vand.u32 %v708, 2147483648
    %v793 = vor.u32 1.1754944e-38, %v792
    %v794 = vsel %vm791, %v793, %v789
    %v795 = vrcp.pop %v709
    %v796 = vmul.f32 %v709, %v795
    %v797 = vsub.f32 1.0, %v796
    %v798 = vmul.f32 %v795, %v797
    %v799 = vadd.f32 %v795, %v798
    %vm800 = vweird.f32 %v709
    %vm801 = vweird.f32 %v795
    %vm802 = vmor %vm800, %vm801
    %v803 = vsel %vm802, %v795, %v799
    %v804 = vand.u32 2147483647, %v709
    %vm805 = vcmp.eq.f32.partialorder %v804, 8.507059e+37
    %v806 = vand.u32 %v709, 2147483648
    %v807 = vor.u32 1.1754944e-38, %v806
    %v808 = vsel %vm805, %v807, %v803
    %v809 = vrcp.pop %v710
    %v810 = vmul.f32 %v710, %v809
    %v811 = vsub.f32 1.0, %v810
    %v812 = vmul.f32 %v809, %v811
    %v813 = vadd.f32 %v809, %v812
    %vm814 = vweird.f32 %v710
    %vm815 = vweird.f32 %v809
    %vm816 = vmor %vm814, %vm815
    %v817 = vsel %vm816, %v809, %v813
    %v818 = vand.u32 2147483647, %v710
    %vm819 = vcmp.eq.f32.partialorder %v818, 8.507059e+37
    %v820 = vand.u32 %v710, 2147483648
    %v821 = vor.u32 1.1754944e-38, %v820
    %v822 = vsel %vm819, %v821, %v817
    %v823 = vmul.f32 %v616, %v724
    %v824 = vmul.f32 %v618, %v738
    %v825 = vmul.f32 %v620, %v752
    %v826 = vmul.f32 %v622, %v766
    %v827 = vmul.f32 %v624, %v780
    %v828 = vmul.f32 %v626, %v794
    %v829 = vmul.f32 %v628, %v808
    %v830 = vmul.f32 %v630, %v822
    %v831 = vmul.f32 %v640, %v724
    %v832 = vmul.f32 %v642, %v738
    %v833 = vmul.f32 %v644, %v752
    %v834 = vmul.f32 %v646, %v766
    %v835 = vmul.f32 %v648, %v780
    %v836 = vmul.f32 %v650, %v794
    %v837 = vmul.f32 %v652, %v808
    %v838 = vmul.f32 %v654, %v822
    %v840 = vsel %vm341, %v209, 0
    %v843 = vsel %vm341, %v831, 0
    %v846 = vsel %vm341, %v832, 0
    %848 = vmatpush.xpose.msra.mxu0 0.0
    %849 = vmatpush.xpose.msra.mxu0 0.0
    %850 = vmatpush.xpose.msra.mxu0 0.0
    %851 = vmatpush.xpose.msra.mxu0 0.0
    %852 = vmatpush.xpose.msra.mxu0 0.0
    %853 = vmatpush.xpose.msra.mxu0 0.0
    %854 = vmatpush.xpose.msra.mxu0 0.0
    %855 = vmatpush.xpose.msra.mxu0 0.0
    %856 = vmatpush.xpose.msra.mxu0 0.0
    %857 = vmatpush.xpose.msra.mxu0 0.0
    %858 = vmatpush.xpose.msra.mxu0 0.0
    %859 = vmatpush.xpose.msra.mxu0 0.0
    %860 = vmatpush.xpose.msra.mxu0 0.0
    %861 = vmatpush.xpose.msra.mxu0 0.0
    %862 = vmatpush.xpose.msra.mxu0 %v846
    %863 = vmatpush.xpose.msra.mxu0 %v843
    %864 = vmatmul.f32.gmra.mxu0 %v840
    %v865 = vpop.f32.mrf.mxu0
    %v866 = vadd.f32 0.0, %v865
    %867 = vdwg.mxu0
    %v869 = vsel %vm341, %v210, 0
    %v872 = vsel %vm341, %v833, 0
    %v875 = vsel %vm341, %v834, 0
    %877 = vmatpush.xpose.msra.mxu0 0.0
    %878 = vmatpush.xpose.msra.mxu0 0.0
    %879 = vmatpush.xpose.msra.mxu0 0.0
    %880 = vmatpush.xpose.msra.mxu0 0.0
    %881 = vmatpush.xpose.msra.mxu0 0.0
    %882 = vmatpush.xpose.msra.mxu0 0.0
    %883 = vmatpush.xpose.msra.mxu0 0.0
    %884 = vmatpush.xpose.msra.mxu0 0.0
    %885 = vmatpush.xpose.msra.mxu0 0.0
    %886 = vmatpush.xpose.msra.mxu0 0.0
    %887 = vmatpush.xpose.msra.mxu0 0.0
    %888 = vmatpush.xpose.msra.mxu0 0.0
    %889 = vmatpush.xpose.msra.mxu0 0.0
    %890 = vmatpush.xpose.msra.mxu0 0.0
    %891 = vmatpush.xpose.msra.mxu0 %v875
    %892 = vmatpush.xpose.msra.mxu0 %v872
    %893 = vmatmul.f32.gmra.mxu0 %v869
    %v894 = vpop.f32.mrf.mxu0
    %v895 = vadd.f32 0.0, %v894
    %896 = vdwg.mxu0
    %v898 = vsel %vm341, %v211, 0
    %v901 = vsel %vm341, %v835, 0
    %v904 = vsel %vm341, %v836, 0
    %906 = vmatpush.xpose.msra.mxu0 0.0
    %907 = vmatpush.xpose.msra.mxu0 0.0
    %908 = vmatpush.xpose.msra.mxu0 0.0
    %909 = vmatpush.xpose.msra.mxu0 0.0
    %910 = vmatpush.xpose.msra.mxu0 0.0
    %911 = vmatpush.xpose.msra.mxu0 0.0
    %912 = vmatpush.xpose.msra.mxu0 0.0
    %913 = vmatpush.xpose.msra.mxu0 0.0
    %914 = vmatpush.xpose.msra.mxu0 0.0
    %915 = vmatpush.xpose.msra.mxu0 0.0
    %916 = vmatpush.xpose.msra.mxu0 0.0
    %917 = vmatpush.xpose.msra.mxu0 0.0
    %918 = vmatpush.xpose.msra.mxu0 0.0
    %919 = vmatpush.xpose.msra.mxu0 0.0
    %920 = vmatpush.xpose.msra.mxu0 %v904
    %921 = vmatpush.xpose.msra.mxu0 %v901
    %922 = vmatmul.f32.gmra.mxu0 %v898
    %v923 = vpop.f32.mrf.mxu0
    %v924 = vadd.f32 0.0, %v923
    %925 = vdwg.mxu0
    %v927 = vsel %vm341, %v212, 0
    %v930 = vsel %vm341, %v837, 0
    %v933 = vsel %vm341, %v838, 0
    %935 = vmatpush.xpose.msra.mxu0 0.0
    %936 = vmatpush.xpose.msra.mxu0 0.0
    %937 = vmatpush.xpose.msra.mxu0 0.0
    %938 = vmatpush.xpose.msra.mxu0 0.0
    %939 = vmatpush.xpose.msra.mxu0 0.0
    %940 = vmatpush.xpose.msra.mxu0 0.0
    %941 = vmatpush.xpose.msra.mxu0 0.0
    %942 = vmatpush.xpose.msra.mxu0 0.0
    %943 = vmatpush.xpose.msra.mxu0 0.0
    %944 = vmatpush.xpose.msra.mxu0 0.0
    %945 = vmatpush.xpose.msra.mxu0 0.0
    %946 = vmatpush.xpose.msra.mxu0 0.0
    %947 = vmatpush.xpose.msra.mxu0 0.0
    %948 = vmatpush.xpose.msra.mxu0 0.0
    %949 = vmatpush.xpose.msra.mxu0 %v933
    %950 = vmatpush.xpose.msra.mxu0 %v930
    %951 = vmatmul.f32.gmra.mxu0 %v927
    %v952 = vpop.f32.mrf.mxu0
    %v953 = vadd.f32 0.0, %v952
    %954 = vdwg.mxu0
    %v956 = vsel %vm550, %v194, 0
    %v959 = vsel %vm550, %v823, 0
    %v962 = vsel %vm550, %v824, 0
    %964 = vmatpush.xpose.msra.mxu0 0.0
    %965 = vmatpush.xpose.msra.mxu0 0.0
    %966 = vmatpush.xpose.msra.mxu0 0.0
    %967 = vmatpush.xpose.msra.mxu0 0.0
    %968 = vmatpush.xpose.msra.mxu0 0.0
    %969 = vmatpush.xpose.msra.mxu0 0.0
    %970 = vmatpush.xpose.msra.mxu0 0.0
    %971 = vmatpush.xpose.msra.mxu0 0.0
    %972 = vmatpush.xpose.msra.mxu0 0.0
    %973 = vmatpush.xpose.msra.mxu0 0.0
    %974 = vmatpush.xpose.msra.mxu0 0.0
    %975 = vmatpush.xpose.msra.mxu0 0.0
    %976 = vmatpush.xpose.msra.mxu0 0.0
    %977 = vmatpush.xpose.msra.mxu0 0.0
    %978 = vmatpush.xpose.msra.mxu0 %v962
    %979 = vmatpush.xpose.msra.mxu0 %v959
    %980 = vmatmul.f32.gmra.mxu0 %v956
    %v981 = vpop.f32.mrf.mxu0
    %v982 = vadd.f32 %v866, %v981
    %983 = vdwg.mxu0
    %v985 = vsel %vm550, %v197, 0
    %v988 = vsel %vm550, %v825, 0
    %v991 = vsel %vm550, %v826, 0
    %993 = vmatpush.xpose.msra.mxu0 0.0
    %994 = vmatpush.xpose.msra.mxu0 0.0
    %995 = vmatpush.xpose.msra.mxu0 0.0
    %996 = vmatpush.xpose.msra.mxu0 0.0
    %997 = vmatpush.xpose.msra.mxu0 0.0
    %998 = vmatpush.xpose.msra.mxu0 0.0
    %999 = vmatpush.xpose.msra.mxu0 0.0
    %1000 = vmatpush.xpose.msra.mxu0 0.0
    %1001 = vmatpush.xpose.msra.mxu0 0.0
    %1002 = vmatpush.xpose.msra.mxu0 0.0
    %1003 = vmatpush.xpose.msra.mxu0 0.0
    %1004 = vmatpush.xpose.msra.mxu0 0.0
    %1005 = vmatpush.xpose.msra.mxu0 0.0
    %1006 = vmatpush.xpose.msra.mxu0 0.0
    %1007 = vmatpush.xpose.msra.mxu0 %v991
    %1008 = vmatpush.xpose.msra.mxu0 %v988
    %1009 = vmatmul.f32.gmra.mxu0 %v985
    %v1010 = vpop.f32.mrf.mxu0
    %v1011 = vadd.f32 %v895, %v1010
    %1012 = vdwg.mxu0
    %v1014 = vsel %vm550, %v200, 0
    %v1017 = vsel %vm550, %v827, 0
    %v1020 = vsel %vm550, %v828, 0
    %1022 = vmatpush.xpose.msra.mxu0 0.0
    %1023 = vmatpush.xpose.msra.mxu0 0.0
    %1024 = vmatpush.xpose.msra.mxu0 0.0
    %1025 = vmatpush.xpose.msra.mxu0 0.0
    %1026 = vmatpush.xpose.msra.mxu0 0.0
    %1027 = vmatpush.xpose.msra.mxu0 0.0
    %1028 = vmatpush.xpose.msra.mxu0 0.0
    %1029 = vmatpush.xpose.msra.mxu0 0.0
    %1030 = vmatpush.xpose.msra.mxu0 0.0
    %1031 = vmatpush.xpose.msra.mxu0 0.0
    %1032 = vmatpush.xpose.msra.mxu0 0.0
    %1033 = vmatpush.xpose.msra.mxu0 0.0
    %1034 = vmatpush.xpose.msra.mxu0 0.0
    %1035 = vmatpush.xpose.msra.mxu0 0.0
    %1036 = vmatpush.xpose.msra.mxu0 %v1020
    %1037 = vmatpush.xpose.msra.mxu0 %v1017
    %1038 = vmatmul.f32.gmra.mxu0 %v1014
    %v1039 = vpop.f32.mrf.mxu0
    %v1040 = vadd.f32 %v924, %v1039
    %1041 = vdwg.mxu0
    %v1043 = vsel %vm550, %v203, 0
    %v1046 = vsel %vm550, %v829, 0
    %v1049 = vsel %vm550, %v830, 0
    %1051 = vmatpush.xpose.msra.mxu0 0.0
    %1052 = vmatpush.xpose.msra.mxu0 0.0
    %1053 = vmatpush.xpose.msra.mxu0 0.0
    %1054 = vmatpush.xpose.msra.mxu0 0.0
    %1055 = vmatpush.xpose.msra.mxu0 0.0
    %1056 = vmatpush.xpose.msra.mxu0 0.0
    %1057 = vmatpush.xpose.msra.mxu0 0.0
    %1058 = vmatpush.xpose.msra.mxu0 0.0
    %1059 = vmatpush.xpose.msra.mxu0 0.0
    %1060 = vmatpush.xpose.msra.mxu0 0.0
    %1061 = vmatpush.xpose.msra.mxu0 0.0
    %1062 = vmatpush.xpose.msra.mxu0 0.0
    %1063 = vmatpush.xpose.msra.mxu0 0.0
    %1064 = vmatpush.xpose.msra.mxu0 0.0
    %1065 = vmatpush.xpose.msra.mxu0 %v1049
    %1066 = vmatpush.xpose.msra.mxu0 %v1046
    %1067 = vmatmul.f32.gmra.mxu0 %v1043
    %v1068 = vpop.f32.mrf.mxu0
    %v1069 = vadd.f32 %v953, %v1068
    %1070 = vdwg.mxu0
    %1075 = vrot.lane.b32.xlu0 %v170, 112
    %v1076 = vpop.permute.xlu0 %1075
    %1077 = vrot.lane.b32.xlu0 %v173, 112
    %v1078 = vpop.permute.xlu0 %1077
    %1079 = vrot.lane.b32.xlu0 %v176, 112
    %v1080 = vpop.permute.xlu0 %1079
    %1081 = vrot.lane.b32.xlu0 %v179, 112
    %v1082 = vpop.permute.xlu0 %1081
    %1087 = vxpose.xlu0.b32.start [1/16] %v1076, 128
    %1088 = vxpose.xlu0.b32.cont [2/16] 0.0, 128
    %1089 = vxpose.xlu0.b32.cont [3/16] 0.0, 128
    %1090 = vxpose.xlu0.b32.cont [4/16] 0.0, 128
    %1091 = vxpose.xlu0.b32.cont [5/16] 0.0, 128
    %1092 = vxpose.xlu0.b32.cont [6/16] 0.0, 128
    %1093 = vxpose.xlu0.b32.cont [7/16] 0.0, 128
    %1094 = vxpose.xlu0.b32.cont [8/16] 0.0, 128
    %1095 = vxpose.xlu0.b32.cont [9/16] 0.0, 128
    %1096 = vxpose.xlu0.b32.cont [10/16] 0.0, 128
    %1097 = vxpose.xlu0.b32.cont [11/16] 0.0, 128
    %1098 = vxpose.xlu0.b32.cont [12/16] 0.0, 128
    %1099 = vxpose.xlu0.b32.cont [13/16] 0.0, 128
    %1100 = vxpose.xlu0.b32.cont [14/16] 0.0, 128
    %1101 = vxpose.xlu0.b32.cont [15/16] 0.0, 128
    %1102 = vxpose.xlu0.b32.end [16/16] 0.0, 128
    %v1103 = vpop.trf.xlu0
    %v1104 = vpop.trf.xlu0
    %v1105 = vpop.trf.xlu0
    %v1106 = vpop.trf.xlu0
    %v1107 = vpop.trf.xlu0
    %v1108 = vpop.trf.xlu0
    %v1109 = vpop.trf.xlu0
    %v1110 = vpop.trf.xlu0
    %v1111 = vpop.trf.xlu0
    %v1112 = vpop.trf.xlu0
    %v1113 = vpop.trf.xlu0
    %v1114 = vpop.trf.xlu0
    %v1115 = vpop.trf.xlu0
    %v1116 = vpop.trf.xlu0
    %v1117 = vpop.trf.xlu0
    %v1118 = vpop.trf.xlu0
    %1119 = vxpose.xlu0.b32.start [1/16] %v1078, 128
    %1120 = vxpose.xlu0.b32.cont [2/16] 0.0, 128
    %1121 = vxpose.xlu0.b32.cont [3/16] 0.0, 128
    %1122 = vxpose.xlu0.b32.cont [4/16] 0.0, 128
    %1123 = vxpose.xlu0.b32.cont [5/16] 0.0, 128
    %1124 = vxpose.xlu0.b32.cont [6/16] 0.0, 128
    %1125 = vxpose.xlu0.b32.cont [7/16] 0.0, 128
    %1126 = vxpose.xlu0.b32.cont [8/16] 0.0, 128
    %1127 = vxpose.xlu0.b32.cont [9/16] 0.0, 128
    %1128 = vxpose.xlu0.b32.cont [10/16] 0.0, 128
    %1129 = vxpose.xlu0.b32.cont [11/16] 0.0, 128
    %1130 = vxpose.xlu0.b32.cont [12/16] 0.0, 128
    %1131 = vxpose.xlu0.b32.cont [13/16] 0.0, 128
    %1132 = vxpose.xlu0.b32.cont [14/16] 0.0, 128
    %1133 = vxpose.xlu0.b32.cont [15/16] 0.0, 128
    %1134 = vxpose.xlu0.b32.end [16/16] 0.0, 128
    %v1135 = vpop.trf.xlu0
    %v1136 = vpop.trf.xlu0
    %v1137 = vpop.trf.xlu0
    %v1138 = vpop.trf.xlu0
    %v1139 = vpop.trf.xlu0
    %v1140 = vpop.trf.xlu0
    %v1141 = vpop.trf.xlu0
    %v1142 = vpop.trf.xlu0
    %v1143 = vpop.trf.xlu0
    %v1144 = vpop.trf.xlu0
    %v1145 = vpop.trf.xlu0
    %v1146 = vpop.trf.xlu0
    %v1147 = vpop.trf.xlu0
    %v1148 = vpop.trf.xlu0
    %v1149 = vpop.trf.xlu0
    %v1150 = vpop.trf.xlu0
    %1151 = vxpose.xlu0.b32.start [1/16] %v1080, 128
    %1152 = vxpose.xlu0.b32.cont [2/16] 0.0, 128
    %1153 = vxpose.xlu0.b32.cont [3/16] 0.0, 128
    %1154 = vxpose.xlu0.b32.cont [4/16] 0.0, 128
    %1155 = vxpose.xlu0.b32.cont [5/16] 0.0, 128
    %1156 = vxpose.xlu0.b32.cont [6/16] 0.0, 128
    %1157 = vxpose.xlu0.b32.cont [7/16] 0.0, 128
    %1158 = vxpose.xlu0.b32.cont [8/16] 0.0, 128
    %1159 = vxpose.xlu0.b32.cont [9/16] 0.0, 128
    %1160 = vxpose.xlu0.b32.cont [10/16] 0.0, 128
    %1161 = vxpose.xlu0.b32.cont [11/16] 0.0, 128
    %1162 = vxpose.xlu0.b32.cont [12/16] 0.0, 128
    %1163 = vxpose.xlu0.b32.cont [13/16] 0.0, 128
    %1164 = vxpose.xlu0.b32.cont [14/16] 0.0, 128
    %1165 = vxpose.xlu0.b32.cont [15/16] 0.0, 128
    %1166 = vxpose.xlu0.b32.end [16/16] 0.0, 128
    %v1167 = vpop.trf.xlu0
    %v1168 = vpop.trf.xlu0
    %v1169 = vpop.trf.xlu0
    %v1170 = vpop.trf.xlu0
    %v1171 = vpop.trf.xlu0
    %v1172 = vpop.trf.xlu0
    %v1173 = vpop.trf.xlu0
    %v1174 = vpop.trf.xlu0
    %v1175 = vpop.trf.xlu0
    %v1176 = vpop.trf.xlu0
    %v1177 = vpop.trf.xlu0
    %v1178 = vpop.trf.xlu0
    %v1179 = vpop.trf.xlu0
    %v1180 = vpop.trf.xlu0
    %v1181 = vpop.trf.xlu0
    %v1182 = vpop.trf.xlu0
    %1183 = vxpose.xlu0.b32.start [1/16] %v1082, 128
    %1184 = vxpose.xlu0.b32.cont [2/16] 0.0, 128
    %1185 = vxpose.xlu0.b32.cont [3/16] 0.0, 128
    %1186 = vxpose.xlu0.b32.cont [4/16] 0.0, 128
    %1187 = vxpose.xlu0.b32.cont [5/16] 0.0, 128
    %1188 = vxpose.xlu0.b32.cont [6/16] 0.0, 128
    %1189 = vxpose.xlu0.b32.cont [7/16] 0.0, 128
    %1190 = vxpose.xlu0.b32.cont [8/16] 0.0, 128
    %1191 = vxpose.xlu0.b32.cont [9/16] 0.0, 128
    %1192 = vxpose.xlu0.b32.cont [10/16] 0.0, 128
    %1193 = vxpose.xlu0.b32.cont [11/16] 0.0, 128
    %1194 = vxpose.xlu0.b32.cont [12/16] 0.0, 128
    %1195 = vxpose.xlu0.b32.cont [13/16] 0.0, 128
    %1196 = vxpose.xlu0.b32.cont [14/16] 0.0, 128
    %1197 = vxpose.xlu0.b32.cont [15/16] 0.0, 128
    %1198 = vxpose.xlu0.b32.end [16/16] 0.0, 128
    %v1199 = vpop.trf.xlu0
    %v1200 = vpop.trf.xlu0
    %v1201 = vpop.trf.xlu0
    %v1202 = vpop.trf.xlu0
    %v1203 = vpop.trf.xlu0
    %v1204 = vpop.trf.xlu0
    %v1205 = vpop.trf.xlu0
    %v1206 = vpop.trf.xlu0
    %v1207 = vpop.trf.xlu0
    %v1208 = vpop.trf.xlu0
    %v1209 = vpop.trf.xlu0
    %v1210 = vpop.trf.xlu0
    %v1211 = vpop.trf.xlu0
    %v1212 = vpop.trf.xlu0
    %v1213 = vpop.trf.xlu0
    %v1214 = vpop.trf.xlu0
    %1216 = vrot.lane.b32.xlu0 %v182, 112
    %v1217 = vpop.permute.xlu0 %1216
    %v1220 = vsel %vm341, %v1103, 0
    %v1223 = vsel %vm341, %v1104, 0
    %1225 = vmatpush.msra.mxu0 0.0
    %1226 = vmatpush.msra.mxu0 0.0
    %1227 = vmatpush.msra.mxu0 0.0
    %1228 = vmatpush.msra.mxu0 0.0
    %1229 = vmatpush.msra.mxu0 0.0
    %1230 = vmatpush.msra.mxu0 0.0
    %1231 = vmatpush.msra.mxu0 0.0
    %1232 = vmatpush.msra.mxu0 0.0
    %1233 = vmatpush.msra.mxu0 0.0
    %1234 = vmatpush.msra.mxu0 0.0
    %1235 = vmatpush.msra.mxu0 0.0
    %1236 = vmatpush.msra.mxu0 0.0
    %1237 = vmatpush.msra.mxu0 0.0
    %1238 = vmatpush.msra.mxu0 0.0
    %1239 = vmatpush.msra.mxu0 0.0
    %1240 = vmatpush.msra.mxu0 %v1217
    %1241 = vmatmul.f32.gmra.mxu0 %v1220
    %v1242 = vpop.f32.mrf.mxu0
    %v1243 = vadd.f32 0.0, %v1242
    %1244 = vmatmul.f32.gmra.mxu0 %v1223
    %v1245 = vpop.f32.mrf.mxu0
    %v1246 = vadd.f32 0.0, %v1245
    %1247 = vdwg.mxu0
    %1249 = vrot.lane.b32.xlu0 %v185, 112
    %v1250 = vpop.permute.xlu0 %1249
    %v1253 = vsel %vm341, %v1135, 0
    %v1256 = vsel %vm341, %v1136, 0
    %1258 = vmatpush.msra.mxu0 0.0
    %1259 = vmatpush.msra.mxu0 0.0
    %1260 = vmatpush.msra.mxu0 0.0
    %1261 = vmatpush.msra.mxu0 0.0
    %1262 = vmatpush.msra.mxu0 0.0
    %1263 = vmatpush.msra.mxu0 0.0
    %1264 = vmatpush.msra.mxu0 0.0
    %1265 = vmatpush.msra.mxu0 0.0
    %1266 = vmatpush.msra.mxu0 0.0
    %1267 = vmatpush.msra.mxu0 0.0
    %1268 = vmatpush.msra.mxu0 0.0
    %1269 = vmatpush.msra.mxu0 0.0
    %1270 = vmatpush.msra.mxu0 0.0
    %1271 = vmatpush.msra.mxu0 0.0
    %1272 = vmatpush.msra.mxu0 0.0
    %1273 = vmatpush.msra.mxu0 %v1250
    %1274 = vmatmul.f32.gmra.mxu0 %v1253
    %v1275 = vpop.f32.mrf.mxu0
    %v1276 = vadd.f32 0.0, %v1275
    %1277 = vmatmul.f32.gmra.mxu0 %v1256
    %v1278 = vpop.f32.mrf.mxu0
    %v1279 = vadd.f32 0.0, %v1278
    %1280 = vdwg.mxu0
    %1282 = vrot.lane.b32.xlu0 %v188, 112
    %v1283 = vpop.permute.xlu0 %1282
    %v1286 = vsel %vm341, %v1167, 0
    %v1289 = vsel %vm341, %v1168, 0
    %1291 = vmatpush.msra.mxu0 0.0
    %1292 = vmatpush.msra.mxu0 0.0
    %1293 = vmatpush.msra.mxu0 0.0
    %1294 = vmatpush.msra.mxu0 0.0
    %1295 = vmatpush.msra.mxu0 0.0
    %1296 = vmatpush.msra.mxu0 0.0
    %1297 = vmatpush.msra.mxu0 0.0
    %1298 = vmatpush.msra.mxu0 0.0
    %1299 = vmatpush.msra.mxu0 0.0
    %1300 = vmatpush.msra.mxu0 0.0
    %1301 = vmatpush.msra.mxu0 0.0
    %1302 = vmatpush.msra.mxu0 0.0
    %1303 = vmatpush.msra.mxu0 0.0
    %1304 = vmatpush.msra.mxu0 0.0
    %1305 = vmatpush.msra.mxu0 0.0
    %1306 = vmatpush.msra.mxu0 %v1283
    %1307 = vmatmul.f32.gmra.mxu0 %v1286
    %v1308 = vpop.f32.mrf.mxu0
    %v1309 = vadd.f32 0.0, %v1308
    %1310 = vmatmul.f32.gmra.mxu0 %v1289
    %v1311 = vpop.f32.mrf.mxu0
    %v1312 = vadd.f32 0.0, %v1311
    %1313 = vdwg.mxu0
    %1315 = vrot.lane.b32.xlu0 %v191, 112
    %v1316 = vpop.permute.xlu0 %1315
    %v1319 = vsel %vm341, %v1199, 0
    %v1322 = vsel %vm341, %v1200, 0
    %1324 = vmatpush.msra.mxu0 0.0
    %1325 = vmatpush.msra.mxu0 0.0
    %1326 = vmatpush.msra.mxu0 0.0
    %1327 = vmatpush.msra.mxu0 0.0
    %1328 = vmatpush.msra.mxu0 0.0
    %1329 = vmatpush.msra.mxu0 0.0
    %1330 = vmatpush.msra.mxu0 0.0
    %1331 = vmatpush.msra.mxu0 0.0
    %1332 = vmatpush.msra.mxu0 0.0
    %1333 = vmatpush.msra.mxu0 0.0
    %1334 = vmatpush.msra.mxu0 0.0
    %1335 = vmatpush.msra.mxu0 0.0
    %1336 = vmatpush.msra.mxu0 0.0
    %1337 = vmatpush.msra.mxu0 0.0
    %1338 = vmatpush.msra.mxu0 0.0
    %1339 = vmatpush.msra.mxu0 %v1316
    %1340 = vmatmul.f32.gmra.mxu0 %v1319
    %v1341 = vpop.f32.mrf.mxu0
    %v1342 = vadd.f32 0.0, %v1341
    %1343 = vmatmul.f32.gmra.mxu0 %v1322
    %v1344 = vpop.f32.mrf.mxu0
    %v1345 = vadd.f32 0.0, %v1344
    %1346 = vdwg.mxu0
    %1347 = vmatpush.msra.mxu0 0.0
    %1348 = vmatpush.msra.mxu0 0.0
    %1349 = vmatpush.msra.mxu0 0.0
    %1350 = vmatpush.msra.mxu0 0.0
    %1351 = vmatpush.msra.mxu0 0.0
    %1352 = vmatpush.msra.mxu0 0.0
    %1353 = vmatpush.msra.mxu0 0.0
    %1354 = vmatpush.msra.mxu0 0.0
    %1355 = vmatpush.msra.mxu0 0.0
    %1356 = vmatpush.msra.mxu0 0.0
    %1357 = vmatpush.msra.mxu0 0.0
    %1358 = vmatpush.msra.mxu0 0.0
    %1359 = vmatpush.msra.mxu0 0.0
    %1360 = vmatpush.msra.mxu0 0.0
    %1361 = vmatpush.msra.mxu0 0.0
    %1362 = vmatpush.msra.mxu0 %v205
    %1363 = vmatmul.f32.gmra.mxu0 %v1220
    %v1364 = vpop.f32.mrf.mxu0
    %v1365 = vadd.f32 0.0, %v1364
    %1366 = vmatmul.f32.gmra.mxu0 %v1223
    %v1367 = vpop.f32.mrf.mxu0
    %v1368 = vadd.f32 0.0, %v1367
    %1369 = vdwg.mxu0
    %1370 = vmatpush.msra.mxu0 0.0
    %1371 = vmatpush.msra.mxu0 0.0
    %1372 = vmatpush.msra.mxu0 0.0
    %1373 = vmatpush.msra.mxu0 0.0
    %1374 = vmatpush.msra.mxu0 0.0
    %1375 = vmatpush.msra.mxu0 0.0
    %1376 = vmatpush.msra.mxu0 0.0
    %1377 = vmatpush.msra.mxu0 0.0
    %1378 = vmatpush.msra.mxu0 0.0
    %1379 = vmatpush.msra.mxu0 0.0
    %1380 = vmatpush.msra.mxu0 0.0
    %1381 = vmatpush.msra.mxu0 0.0
    %1382 = vmatpush.msra.mxu0 0.0
    %1383 = vmatpush.msra.mxu0 0.0
    %1384 = vmatpush.msra.mxu0 0.0
    %1385 = vmatpush.msra.mxu0 %v206
    %1386 = vmatmul.f32.gmra.mxu0 %v1253
    %v1387 = vpop.f32.mrf.mxu0
    %v1388 = vadd.f32 0.0, %v1387
    %1389 = vmatmul.f32.gmra.mxu0 %v1256
    %v1390 = vpop.f32.mrf.mxu0
    %v1391 = vadd.f32 0.0, %v1390
    %1392 = vdwg.mxu0
    %1393 = vmatpush.msra.mxu0 0.0
    %1394 = vmatpush.msra.mxu0 0.0
    %1395 = vmatpush.msra.mxu0 0.0
    %1396 = vmatpush.msra.mxu0 0.0
    %1397 = vmatpush.msra.mxu0 0.0
    %1398 = vmatpush.msra.mxu0 0.0
    %1399 = vmatpush.msra.mxu0 0.0
    %1400 = vmatpush.msra.mxu0 0.0
    %1401 = vmatpush.msra.mxu0 0.0
    %1402 = vmatpush.msra.mxu0 0.0
    %1403 = vmatpush.msra.mxu0 0.0
    %1404 = vmatpush.msra.mxu0 0.0
    %1405 = vmatpush.msra.mxu0 0.0
    %1406 = vmatpush.msra.mxu0 0.0
    %1407 = vmatpush.msra.mxu0 0.0
    %1408 = vmatpush.msra.mxu0 %v207
    %1409 = vmatmul.f32.gmra.mxu0 %v1286
    %v1410 = vpop.f32.mrf.mxu0
    %v1411 = vadd.f32 0.0, %v1410
    %1412 = vmatmul.f32.gmra.mxu0 %v1289
    %v1413 = vpop.f32.mrf.mxu0
    %v1414 = vadd.f32 0.0, %v1413
    %1415 = vdwg.mxu0
    %1416 = vmatpush.msra.mxu0 0.0
    %1417 = vmatpush.msra.mxu0 0.0
    %1418 = vmatpush.msra.mxu0 0.0
    %1419 = vmatpush.msra.mxu0 0.0
    %1420 = vmatpush.msra.mxu0 0.0
    %1421 = vmatpush.msra.mxu0 0.0
    %1422 = vmatpush.msra.mxu0 0.0
    %1423 = vmatpush.msra.mxu0 0.0
    %1424 = vmatpush.msra.mxu0 0.0
    %1425 = vmatpush.msra.mxu0 0.0
    %1426 = vmatpush.msra.mxu0 0.0
    %1427 = vmatpush.msra.mxu0 0.0
    %1428 = vmatpush.msra.mxu0 0.0
    %1429 = vmatpush.msra.mxu0 0.0
    %1430 = vmatpush.msra.mxu0 0.0
    %1431 = vmatpush.msra.mxu0 %v208
    %1432 = vmatmul.f32.gmra.mxu0 %v1319
    %v1433 = vpop.f32.mrf.mxu0
    %v1434 = vadd.f32 0.0, %v1433
    %1435 = vmatmul.f32.gmra.mxu0 %v1322
    %v1436 = vpop.f32.mrf.mxu0
    %v1437 = vadd.f32 0.0, %v1436
    %1438 = vdwg.mxu0
    %v1439 = vsel %vm550, %v1243, -inf
    %1440 = vmax.xlane.f32.xlu0 %v1439
    %v1441 = vpop.xlane.xlu0 %1440
    %v1442 = vsel %vm550, %v1246, -inf
    %1443 = vmax.xlane.f32.xlu0 %v1442
    %v1444 = vpop.xlane.xlu0 %1443
    %v1445 = vsel %vm550, %v1276, -inf
    %1446 = vmax.xlane.f32.xlu0 %v1445
    %v1447 = vpop.xlane.xlu0 %1446
    %v1448 = vsel %vm550, %v1279, -inf
    %1449 = vmax.xlane.f32.xlu0 %v1448
    %v1450 = vpop.xlane.xlu0 %1449
    %v1451 = vsel %vm550, %v1309, -inf
    %1452 = vmax.xlane.f32.xlu0 %v1451
    %v1453 = vpop.xlane.xlu0 %1452
    %v1454 = vsel %vm550, %v1312, -inf
    %1455 = vmax.xlane.f32.xlu0 %v1454
    %v1456 = vpop.xlane.xlu0 %1455
    %v1457 = vsel %vm550, %v1342, -inf
    %1458 = vmax.xlane.f32.xlu0 %v1457
    %v1459 = vpop.xlane.xlu0 %1458
    %v1460 = vsel %vm550, %v1345, -inf
    %1461 = vmax.xlane.f32.xlu0 %v1460
    %v1462 = vpop.xlane.xlu0 %1461
    %v1463 = vsel %vm341, %v1365, -inf
    %1464 = vmax.xlane.f32.xlu0 %v1463
    %v1465 = vpop.xlane.xlu0 %1464
    %v1466 = vsel %vm341, %v1368, -inf
    %1467 = vmax.xlane.f32.xlu0 %v1466
    %v1468 = vpop.xlane.xlu0 %1467
    %v1469 = vsel %vm341, %v1388, -inf
    %1470 = vmax.xlane.f32.xlu0 %v1469
    %v1471 = vpop.xlane.xlu0 %1470
    %v1472 = vsel %vm341, %v1391, -inf
    %1473 = vmax.xlane.f32.xlu0 %v1472
    %v1474 = vpop.xlane.xlu0 %1473
    %v1475 = vsel %vm341, %v1411, -inf
    %1476 = vmax.xlane.f32.xlu0 %v1475
    %v1477 = vpop.xlane.xlu0 %1476
    %v1478 = vsel %vm341, %v1414, -inf
    %1479 = vmax.xlane.f32.xlu0 %v1478
    %v1480 = vpop.xlane.xlu0 %1479
    %v1481 = vsel %vm341, %v1434, -inf
    %1482 = vmax.xlane.f32.xlu0 %v1481
    %v1483 = vpop.xlane.xlu0 %1482
    %v1484 = vsel %vm341, %v1437, -inf
    %1485 = vmax.xlane.f32.xlu0 %v1484
    %v1486 = vpop.xlane.xlu0 %1485
    %v1487 = vmax.f32 %v1441, %v1465
    %v1488 = vmax.f32 %v1444, %v1468
    %v1489 = vmax.f32 %v1447, %v1471
    %v1490 = vmax.f32 %v1450, %v1474
    %v1491 = vmax.f32 %v1453, %v1477
    %v1492 = vmax.f32 %v1456, %v1480
    %v1493 = vmax.f32 %v1459, %v1483
    %v1494 = vmax.f32 %v1462, %v1486
    %v1495 = vsub.f32 %v1243, %v1487
    %v1496 = vsub.f32 %v1246, %v1488
    %v1497 = vsub.f32 %v1276, %v1489
    %v1498 = vsub.f32 %v1279, %v1490
    %v1499 = vsub.f32 %v1309, %v1491
    %v1500 = vsub.f32 %v1312, %v1492
    %v1501 = vsub.f32 %v1342, %v1493
    %v1502 = vsub.f32 %v1345, %v1494
    %v1503 = vmul.f32 %v1495, 1.442695
    %v1504 = vpow.pop %v1503
    %v1505 = vmul.f32 %v1496, 1.442695
    %v1506 = vpow.pop %v1505
    %v1507 = vmul.f32 %v1497, 1.442695
    %v1508 = vpow.pop %v1507
    %v1509 = vmul.f32 %v1498, 1.442695
    %v1510 = vpow.pop %v1509
    %v1511 = vmul.f32 %v1499, 1.442695
    %v1512 = vpow.pop %v1511
    %v1513 = vmul.f32 %v1500, 1.442695
    %v1514 = vpow.pop %v1513
    %v1515 = vmul.f32 %v1501, 1.442695
    %v1516 = vpow.pop %v1515
    %v1517 = vmul.f32 %v1502, 1.442695
    %v1518 = vpow.pop %v1517
    %v1519 = vsub.f32 %v1365, %v1487
    %v1520 = vsub.f32 %v1368, %v1488
    %v1521 = vsub.f32 %v1388, %v1489
    %v1522 = vsub.f32 %v1391, %v1490
    %v1523 = vsub.f32 %v1411, %v1491
    %v1524 = vsub.f32 %v1414, %v1492
    %v1525 = vsub.f32 %v1434, %v1493
    %v1526 = vsub.f32 %v1437, %v1494
    %v1527 = vmul.f32 %v1519, 1.442695
    %v1528 = vpow.pop %v1527
    %v1529 = vmul.f32 %v1520, 1.442695
    %v1530 = vpow.pop %v1529
    %v1531 = vmul.f32 %v1521, 1.442695
    %v1532 = vpow.pop %v1531
    %v1533 = vmul.f32 %v1522, 1.442695
    %v1534 = vpow.pop %v1533
    %v1535 = vmul.f32 %v1523, 1.442695
    %v1536 = vpow.pop %v1535
    %v1537 = vmul.f32 %v1524, 1.442695
    %v1538 = vpow.pop %v1537
    %v1539 = vmul.f32 %v1525, 1.442695
    %v1540 = vpow.pop %v1539
    %v1541 = vmul.f32 %v1526, 1.442695
    %v1542 = vpow.pop %v1541
    %v1543 = vsel %vm550, %v1504, 0.0
    %1544 = vadd.xlane.f32.xlu0 %v1543
    %v1545 = vpop.xlane.xlu0 %1544
    %v1546 = vsel %vm550, %v1506, 0.0
    %1547 = vadd.xlane.f32.xlu0 %v1546
    %v1548 = vpop.xlane.xlu0 %1547
    %v1549 = vsel %vm550, %v1508, 0.0
    %1550 = vadd.xlane.f32.xlu0 %v1549
    %v1551 = vpop.xlane.xlu0 %1550
    %v1552 = vsel %vm550, %v1510, 0.0
    %1553 = vadd.xlane.f32.xlu0 %v1552
    %v1554 = vpop.xlane.xlu0 %1553
    %v1555 = vsel %vm550, %v1512, 0.0
    %1556 = vadd.xlane.f32.xlu0 %v1555
    %v1557 = vpop.xlane.xlu0 %1556
    %v1558 = vsel %vm550, %v1514, 0.0
    %1559 = vadd.xlane.f32.xlu0 %v1558
    %v1560 = vpop.xlane.xlu0 %1559
    %v1561 = vsel %vm550, %v1516, 0.0
    %1562 = vadd.xlane.f32.xlu0 %v1561
    %v1563 = vpop.xlane.xlu0 %1562
    %v1564 = vsel %vm550, %v1518, 0.0
    %1565 = vadd.xlane.f32.xlu0 %v1564
    %v1566 = vpop.xlane.xlu0 %1565
    %v1567 = vsel %vm341, %v1528, 0.0
    %1568 = vadd.xlane.f32.xlu0 %v1567
    %v1569 = vpop.xlane.xlu0 %1568
    %v1570 = vsel %vm341, %v1530, 0.0
    %1571 = vadd.xlane.f32.xlu0 %v1570
    %v1572 = vpop.xlane.xlu0 %1571
    %v1573 = vsel %vm341, %v1532, 0.0
    %1574 = vadd.xlane.f32.xlu0 %v1573
    %v1575 = vpop.xlane.xlu0 %1574
    %v1576 = vsel %vm341, %v1534, 0.0
    %1577 = vadd.xlane.f32.xlu0 %v1576
    %v1578 = vpop.xlane.xlu0 %1577
    %v1579 = vsel %vm341, %v1536, 0.0
    %1580 = vadd.xlane.f32.xlu0 %v1579
    %v1581 = vpop.xlane.xlu0 %1580
    %v1582 = vsel %vm341, %v1538, 0.0
    %1583 = vadd.xlane.f32.xlu0 %v1582
    %v1584 = vpop.xlane.xlu0 %1583
    %v1585 = vsel %vm341, %v1540, 0.0
    %1586 = vadd.xlane.f32.xlu0 %v1585
    %v1587 = vpop.xlane.xlu0 %1586
    %v1588 = vsel %vm341, %v1542, 0.0
    %1589 = vadd.xlane.f32.xlu0 %v1588
    %v1590 = vpop.xlane.xlu0 %1589
    %v1591 = vadd.f32 %v1545, %v1569
    %v1592 = vadd.f32 %v1548, %v1572
    %v1593 = vadd.f32 %v1551, %v1575
    %v1594 = vadd.f32 %v1554, %v1578
    %v1595 = vadd.f32 %v1557, %v1581
    %v1596 = vadd.f32 %v1560, %v1584
    %v1597 = vadd.f32 %v1563, %v1587
    %v1598 = vadd.f32 %v1566, %v1590
    %v1599 = vrcp.pop %v1591
    %v1600 = vmul.f32 %v1591, %v1599
    %v1601 = vsub.f32 1.0, %v1600
    %v1602 = vmul.f32 %v1599, %v1601
    %v1603 = vadd.f32 %v1599, %v1602
    %vm1604 = vweird.f32 %v1591
    %vm1605 = vweird.f32 %v1599
    %vm1606 = vmor %vm1604, %vm1605
    %v1607 = vsel %vm1606, %v1599, %v1603
    %v1608 = vand.u32 2147483647, %v1591
    %vm1609 = vcmp.eq.f32.partialorder %v1608, 8.507059e+37
    %v1610 = vand.u32 %v1591, 2147483648
    %v1611 = vor.u32 1.1754944e-38, %v1610
    %v1612 = vsel %vm1609, %v1611, %v1607
    %v1613 = vrcp.pop %v1592
    %v1614 = vmul.f32 %v1592, %v1613
    %v1615 = vsub.f32 1.0, %v1614
    %v1616 = vmul.f32 %v1613, %v1615
    %v1617 = vadd.f32 %v1613, %v1616
    %vm1618 = vweird.f32 %v1592
    %vm1619 = vweird.f32 %v1613
    %vm1620 = vmor %vm1618, %vm1619
    %v1621 = vsel %vm1620, %v1613, %v1617
    %v1622 = vand.u32 2147483647, %v1592
    %vm1623 = vcmp.eq.f32.partialorder %v1622, 8.507059e+37
    %v1624 = vand.u32 %v1592, 2147483648
    %v1625 = vor.u32 1.1754944e-38, %v1624
    %v1626 = vsel %vm1623, %v1625, %v1621
    %v1627 = vrcp.pop %v1593
    %v1628 = vmul.f32 %v1593, %v1627
    %v1629 = vsub.f32 1.0, %v1628
    %v1630 = vmul.f32 %v1627, %v1629
    %v1631 = vadd.f32 %v1627, %v1630
    %vm1632 = vweird.f32 %v1593
    %vm1633 = vweird.f32 %v1627
    %vm1634 = vmor %vm1632, %vm1633
    %v1635 = vsel %vm1634, %v1627, %v1631
    %v1636 = vand.u32 2147483647, %v1593
    %vm1637 = vcmp.eq.f32.partialorder %v1636, 8.507059e+37
    %v1638 = vand.u32 %v1593, 2147483648
    %v1639 = vor.u32 1.1754944e-38, %v1638
    %v1640 = vsel %vm1637, %v1639, %v1635
    %v1641 = vrcp.pop %v1594
    %v1642 = vmul.f32 %v1594, %v1641
    %v1643 = vsub.f32 1.0, %v1642
    %v1644 = vmul.f32 %v1641, %v1643
    %v1645 = vadd.f32 %v1641, %v1644
    %vm1646 = vweird.f32 %v1594
    %vm1647 = vweird.f32 %v1641
    %vm1648 = vmor %vm1646, %vm1647
    %v1649 = vsel %vm1648, %v1641, %v1645
    %v1650 = vand.u32 2147483647, %v1594
    %vm1651 = vcmp.eq.f32.partialorder %v1650, 8.507059e+37
    %v1652 = vand.u32 %v1594, 2147483648
    %v1653 = vor.u32 1.1754944e-38, %v1652
    %v1654 = vsel %vm1651, %v1653, %v1649
    %v1655 = vrcp.pop %v1595
    %v1656 = vmul.f32 %v1595, %v1655
    %v1657 = vsub.f32 1.0, %v1656
    %v1658 = vmul.f32 %v1655, %v1657
    %v1659 = vadd.f32 %v1655, %v1658
    %vm1660 = vweird.f32 %v1595
    %vm1661 = vweird.f32 %v1655
    %vm1662 = vmor %vm1660, %vm1661
    %v1663 = vsel %vm1662, %v1655, %v1659
    %v1664 = vand.u32 2147483647, %v1595
    %vm1665 = vcmp.eq.f32.partialorder %v1664, 8.507059e+37
    %v1666 = vand.u32 %v1595, 2147483648
    %v1667 = vor.u32 1.1754944e-38, %v1666
    %v1668 = vsel %vm1665, %v1667, %v1663
    %v1669 = vrcp.pop %v1596
    %v1670 = vmul.f32 %v1596, %v1669
    %v1671 = vsub.f32 1.0, %v1670
    %v1672 = vmul.f32 %v1669, %v1671
    %v1673 = vadd.f32 %v1669, %v1672
    %vm1674 = vweird.f32 %v1596
    %vm1675 = vweird.f32 %v1669
    %vm1676 = vmor %vm1674, %vm1675
    %v1677 = vsel %vm1676, %v1669, %v1673
    %v1678 = vand.u32 2147483647, %v1596
    %vm1679 = vcmp.eq.f32.partialorder %v1678, 8.507059e+37
    %v1680 = vand.u32 %v1596, 2147483648
    %v1681 = vor.u32 1.1754944e-38, %v1680
    %v1682 = vsel %vm1679, %v1681, %v1677
    %v1683 = vrcp.pop %v1597
    %v1684 = vmul.f32 %v1597, %v1683
    %v1685 = vsub.f32 1.0, %v1684
    %v1686 = vmul.f32 %v1683, %v1685
    %v1687 = vadd.f32 %v1683, %v1686
    %vm1688 = vweird.f32 %v1597
    %vm1689 = vweird.f32 %v1683
    %vm1690 = vmor %vm1688, %vm1689
    %v1691 = vsel %vm1690, %v1683, %v1687
    %v1692 = vand.u32 2147483647, %v1597
    %vm1693 = vcmp.eq.f32.partialorder %v1692, 8.507059e+37
    %v1694 = vand.u32 %v1597, 2147483648
    %v1695 = vor.u32 1.1754944e-38, %v1694
    %v1696 = vsel %vm1693, %v1695, %v1691
    %v1697 = vrcp.pop %v1598
    %v1698 = vmul.f32 %v1598, %v1697
    %v1699 = vsub.f32 1.0, %v1698
    %v1700 = vmul.f32 %v1697, %v1699
    %v1701 = vadd.f32 %v1697, %v1700
    %vm1702 = vweird.f32 %v1598
    %vm1703 = vweird.f32 %v1697
    %vm1704 = vmor %vm1702, %vm1703
    %v1705 = vsel %vm1704, %v1697, %v1701
    %v1706 = vand.u32 2147483647, %v1598
    %vm1707 = vcmp.eq.f32.partialorder %v1706, 8.507059e+37
    %v1708 = vand.u32 %v1598, 2147483648
    %v1709 = vor.u32 1.1754944e-38, %v1708
    %v1710 = vsel %vm1707, %v1709, %v1705
    %v1711 = vmul.f32 %v1504, %v1612
    %v1712 = vmul.f32 %v1506, %v1626
    %v1713 = vmul.f32 %v1508, %v1640
    %v1714 = vmul.f32 %v1510, %v1654
    %v1715 = vmul.f32 %v1512, %v1668
    %v1716 = vmul.f32 %v1514, %v1682
    %v1717 = vmul.f32 %v1516, %v1696
    %v1718 = vmul.f32 %v1518, %v1710
    %v1719 = vmul.f32 %v1528, %v1612
    %v1720 = vmul.f32 %v1530, %v1626
    %v1721 = vmul.f32 %v1532, %v1640
    %v1722 = vmul.f32 %v1534, %v1654
    %v1723 = vmul.f32 %v1536, %v1668
    %v1724 = vmul.f32 %v1538, %v1682
    %v1725 = vmul.f32 %v1540, %v1696
    %v1726 = vmul.f32 %v1542, %v1710
    %v1728 = vsel %vm341, %v1719, 0
    %v1731 = vsel %vm341, %v1720, 0
    %1733 = vmatpush.xpose.msra.mxu0 0.0
    %1734 = vmatpush.xpose.msra.mxu0 0.0
    %1735 = vmatpush.xpose.msra.mxu0 0.0
    %1736 = vmatpush.xpose.msra.mxu0 0.0
    %1737 = vmatpush.xpose.msra.mxu0 0.0
    %1738 = vmatpush.xpose.msra.mxu0 0.0
    %1739 = vmatpush.xpose.msra.mxu0 0.0
    %1740 = vmatpush.xpose.msra.mxu0 0.0
    %1741 = vmatpush.xpose.msra.mxu0 0.0
    %1742 = vmatpush.xpose.msra.mxu0 0.0
    %1743 = vmatpush.xpose.msra.mxu0 0.0
    %1744 = vmatpush.xpose.msra.mxu0 0.0
    %1745 = vmatpush.xpose.msra.mxu0 0.0
    %1746 = vmatpush.xpose.msra.mxu0 0.0
    %1747 = vmatpush.xpose.msra.mxu0 %v1731
    %1748 = vmatpush.xpose.msra.mxu0 %v1728
    %1749 = vmatmul.f32.gmra.mxu0 %v840
    %v1750 = vpop.f32.mrf.mxu0
    %v1751 = vadd.f32 0.0, %v1750
    %1752 = vdwg.mxu0
    %v1754 = vsel %vm341, %v1721, 0
    %v1757 = vsel %vm341, %v1722, 0
    %1759 = vmatpush.xpose.msra.mxu0 0.0
    %1760 = vmatpush.xpose.msra.mxu0 0.0
    %1761 = vmatpush.xpose.msra.mxu0 0.0
    %1762 = vmatpush.xpose.msra.mxu0 0.0
    %1763 = vmatpush.xpose.msra.mxu0 0.0
    %1764 = vmatpush.xpose.msra.mxu0 0.0
    %1765 = vmatpush.xpose.msra.mxu0 0.0
    %1766 = vmatpush.xpose.msra.mxu0 0.0
    %1767 = vmatpush.xpose.msra.mxu0 0.0
    %1768 = vmatpush.xpose.msra.mxu0 0.0
    %1769 = vmatpush.xpose.msra.mxu0 0.0
    %1770 = vmatpush.xpose.msra.mxu0 0.0
    %1771 = vmatpush.xpose.msra.mxu0 0.0
    %1772 = vmatpush.xpose.msra.mxu0 0.0
    %1773 = vmatpush.xpose.msra.mxu0 %v1757
    %1774 = vmatpush.xpose.msra.mxu0 %v1754
    %1775 = vmatmul.f32.gmra.mxu0 %v869
    %v1776 = vpop.f32.mrf.mxu0
    %v1777 = vadd.f32 0.0, %v1776
    %1778 = vdwg.mxu0
    %v1780 = vsel %vm341, %v1723, 0
    %v1783 = vsel %vm341, %v1724, 0
    %1785 = vmatpush.xpose.msra.mxu0 0.0
    %1786 = vmatpush.xpose.msra.mxu0 0.0
    %1787 = vmatpush.xpose.msra.mxu0 0.0
    %1788 = vmatpush.xpose.msra.mxu0 0.0
    %1789 = vmatpush.xpose.msra.mxu0 0.0
    %1790 = vmatpush.xpose.msra.mxu0 0.0
    %1791 = vmatpush.xpose.msra.mxu0 0.0
    %1792 = vmatpush.xpose.msra.mxu0 0.0
    %1793 = vmatpush.xpose.msra.mxu0 0.0
    %1794 = vmatpush.xpose.msra.mxu0 0.0
    %1795 = vmatpush.xpose.msra.mxu0 0.0
    %1796 = vmatpush.xpose.msra.mxu0 0.0
    %1797 = vmatpush.xpose.msra.mxu0 0.0
    %1798 = vmatpush.xpose.msra.mxu0 0.0
    %1799 = vmatpush.xpose.msra.mxu0 %v1783
    %1800 = vmatpush.xpose.msra.mxu0 %v1780
    %1801 = vmatmul.f32.gmra.mxu0 %v898
    %v1802 = vpop.f32.mrf.mxu0
    %v1803 = vadd.f32 0.0, %v1802
    %1804 = vdwg.mxu0
    %v1806 = vsel %vm341, %v1725, 0
    %v1809 = vsel %vm341, %v1726, 0
    %1811 = vmatpush.xpose.msra.mxu0 0.0
    %1812 = vmatpush.xpose.msra.mxu0 0.0
    %1813 = vmatpush.xpose.msra.mxu0 0.0
    %1814 = vmatpush.xpose.msra.mxu0 0.0
    %1815 = vmatpush.xpose.msra.mxu0 0.0
    %1816 = vmatpush.xpose.msra.mxu0 0.0
    %1817 = vmatpush.xpose.msra.mxu0 0.0
    %1818 = vmatpush.xpose.msra.mxu0 0.0
    %1819 = vmatpush.xpose.msra.mxu0 0.0
    %1820 = vmatpush.xpose.msra.mxu0 0.0
    %1821 = vmatpush.xpose.msra.mxu0 0.0
    %1822 = vmatpush.xpose.msra.mxu0 0.0
    %1823 = vmatpush.xpose.msra.mxu0 0.0
    %1824 = vmatpush.xpose.msra.mxu0 0.0
    %1825 = vmatpush.xpose.msra.mxu0 %v1809
    %1826 = vmatpush.xpose.msra.mxu0 %v1806
    %1827 = vmatmul.f32.gmra.mxu0 %v927
    %v1828 = vpop.f32.mrf.mxu0
    %v1829 = vadd.f32 0.0, %v1828
    %1830 = vdwg.mxu0
    %1831 = vrot.lane.b32.xlu0 %v194, 112
    %v1832 = vpop.permute.xlu0 %1831
    %v1833 = vsel %vm550, %v1832, 0
    %v1836 = vsel %vm550, %v1711, 0
    %v1839 = vsel %vm550, %v1712, 0
    %1841 = vmatpush.xpose.msra.mxu0 0.0
    %1842 = vmatpush.xpose.msra.mxu0 0.0
    %1843 = vmatpush.xpose.msra.mxu0 0.0
    %1844 = vmatpush.xpose.msra.mxu0 0.0
    %1845 = vmatpush.xpose.msra.mxu0 0.0
    %1846 = vmatpush.xpose.msra.mxu0 0.0
    %1847 = vmatpush.xpose.msra.mxu0 0.0
    %1848 = vmatpush.xpose.msra.mxu0 0.0
    %1849 = vmatpush.xpose.msra.mxu0 0.0
    %1850 = vmatpush.xpose.msra.mxu0 0.0
    %1851 = vmatpush.xpose.msra.mxu0 0.0
    %1852 = vmatpush.xpose.msra.mxu0 0.0
    %1853 = vmatpush.xpose.msra.mxu0 0.0
    %1854 = vmatpush.xpose.msra.mxu0 0.0
    %1855 = vmatpush.xpose.msra.mxu0 %v1839
    %1856 = vmatpush.xpose.msra.mxu0 %v1836
    %1857 = vmatmul.f32.gmra.mxu0 %v1833
    %v1858 = vpop.f32.mrf.mxu0
    %v1859 = vadd.f32 %v1751, %v1858
    %1860 = vdwg.mxu0
    %1861 = vrot.lane.b32.xlu0 %v197, 112
    %v1862 = vpop.permute.xlu0 %1861
    %v1863 = vsel %vm550, %v1862, 0
    %v1866 = vsel %vm550, %v1713, 0
    %v1869 = vsel %vm550, %v1714, 0
    %1871 = vmatpush.xpose.msra.mxu0 0.0
    %1872 = vmatpush.xpose.msra.mxu0 0.0
    %1873 = vmatpush.xpose.msra.mxu0 0.0
    %1874 = vmatpush.xpose.msra.mxu0 0.0
    %1875 = vmatpush.xpose.msra.mxu0 0.0
    %1876 = vmatpush.xpose.msra.mxu0 0.0
    %1877 = vmatpush.xpose.msra.mxu0 0.0
    %1878 = vmatpush.xpose.msra.mxu0 0.0
    %1879 = vmatpush.xpose.msra.mxu0 0.0
    %1880 = vmatpush.xpose.msra.mxu0 0.0
    %1881 = vmatpush.xpose.msra.mxu0 0.0
    %1882 = vmatpush.xpose.msra.mxu0 0.0
    %1883 = vmatpush.xpose.msra.mxu0 0.0
    %1884 = vmatpush.xpose.msra.mxu0 0.0
    %1885 = vmatpush.xpose.msra.mxu0 %v1869
    %1886 = vmatpush.xpose.msra.mxu0 %v1866
    %1887 = vmatmul.f32.gmra.mxu0 %v1863
    %v1888 = vpop.f32.mrf.mxu0
    %v1889 = vadd.f32 %v1777, %v1888
    %1890 = vdwg.mxu0
    %1891 = vrot.lane.b32.xlu0 %v200, 112
    %v1892 = vpop.permute.xlu0 %1891
    %v1893 = vsel %vm550, %v1892, 0
    %v1896 = vsel %vm550, %v1715, 0
    %v1899 = vsel %vm550, %v1716, 0
    %1901 = vmatpush.xpose.msra.mxu0 0.0
    %1902 = vmatpush.xpose.msra.mxu0 0.0
    %1903 = vmatpush.xpose.msra.mxu0 0.0
    %1904 = vmatpush.xpose.msra.mxu0 0.0
    %1905 = vmatpush.xpose.msra.mxu0 0.0
    %1906 = vmatpush.xpose.msra.mxu0 0.0
    %1907 = vmatpush.xpose.msra.mxu0 0.0
    %1908 = vmatpush.xpose.msra.mxu0 0.0
    %1909 = vmatpush.xpose.msra.mxu0 0.0
    %1910 = vmatpush.xpose.msra.mxu0 0.0
    %1911 = vmatpush.xpose.msra.mxu0 0.0
    %1912 = vmatpush.xpose.msra.mxu0 0.0
    %1913 = vmatpush.xpose.msra.mxu0 0.0
    %1914 = vmatpush.xpose.msra.mxu0 0.0
    %1915 = vmatpush.xpose.msra.mxu0 %v1899
    %1916 = vmatpush.xpose.msra.mxu0 %v1896
    %1917 = vmatmul.f32.gmra.mxu0 %v1893
    %v1918 = vpop.f32.mrf.mxu0
    %v1919 = vadd.f32 %v1803, %v1918
    %1920 = vdwg.mxu0
    %1921 = vrot.lane.b32.xlu0 %v203, 112
    %v1922 = vpop.permute.xlu0 %1921
    %v1923 = vsel %vm550, %v1922, 0
    %v1926 = vsel %vm550, %v1717, 0
    %v1929 = vsel %vm550, %v1718, 0
    %1931 = vmatpush.xpose.msra.mxu0 0.0
    %1932 = vmatpush.xpose.msra.mxu0 0.0
    %1933 = vmatpush.xpose.msra.mxu0 0.0
    %1934 = vmatpush.xpose.msra.mxu0 0.0
    %1935 = vmatpush.xpose.msra.mxu0 0.0
    %1936 = vmatpush.xpose.msra.mxu0 0.0
    %1937 = vmatpush.xpose.msra.mxu0 0.0
    %1938 = vmatpush.xpose.msra.mxu0 0.0
    %1939 = vmatpush.xpose.msra.mxu0 0.0
    %1940 = vmatpush.xpose.msra.mxu0 0.0
    %1941 = vmatpush.xpose.msra.mxu0 0.0
    %1942 = vmatpush.xpose.msra.mxu0 0.0
    %1943 = vmatpush.xpose.msra.mxu0 0.0
    %1944 = vmatpush.xpose.msra.mxu0 0.0
    %1945 = vmatpush.xpose.msra.mxu0 %v1929
    %1946 = vmatpush.xpose.msra.mxu0 %v1926
    %1947 = vmatmul.f32.gmra.mxu0 %v1923
    %v1948 = vpop.f32.mrf.mxu0
    %v1949 = vadd.f32 %v1829, %v1948
    %1950 = vdwg.mxu0
    %1955 = vrot.lane.b32.xlu0 %v1859, 16
    %v1956 = vpop.permute.xlu0 %1955
    %1957 = vrot.lane.b32.xlu0 %v1889, 16
    %v1958 = vpop.permute.xlu0 %1957
    %1959 = vrot.lane.b32.xlu0 %v1919, 16
    %v1960 = vpop.permute.xlu0 %1959
    %1961 = vrot.lane.b32.xlu0 %v1949, 16
    %v1962 = vpop.permute.xlu0 %1961
    %v1967 = vsel %vm550, %v982, %v1956
    %v1968 = vsel %vm550, %v1011, %v1958
    %v1969 = vsel %vm550, %v1040, %v1960
    %v1970 = vsel %vm550, %v1069, %v1962
    %v1971 = vld [vmem:[%s3] sm:$0xff]
    %v1972 = vld [vmem:[%s3 + $0x8] sm:$0xff]
    %v1973 = vld [vmem:[%s3 + $0x10] sm:$0xff]
    %v1974 = vld [vmem:[%s3 + $0x18] sm:$0xff]
    %v1975 = vld [vmem:[%s4] sm:$0xff]
    %v1976 = vld [vmem:[%s4 + $0x8] sm:$0xff]
    %v1977 = vld [vmem:[%s4 + $0x10] sm:$0xff]
    %v1978 = vld [vmem:[%s4 + $0x18] sm:$0xff]
    %1980 = vset.pattern.permute.xlu0 0
    %1981 = vperm.xlu0 %1980, %v1975
    %v1982 = vpop.permute.xlu0 %1981
    %1985 = vset.pattern.permute.xlu0 0
    %1986 = vperm.xlu0 %1985, %v1976
    %v1987 = vpop.permute.xlu0 %1986
    %1990 = vset.pattern.permute.xlu0 0
    %1991 = vperm.xlu0 %1990, %v1977
    %v1992 = vpop.permute.xlu0 %1991
    %1995 = vset.pattern.permute.xlu0 0
    %1996 = vperm.xlu0 %1995, %v1978
    %v1997 = vpop.permute.xlu0 %1996
    %v2000 = vsel %vm115, %v1971, 0
    %v2003 = vsel %vm115, %v1972, 0
    %v2006 = vsel %vm115, %v1973, 0
    %v2009 = vsel %vm115, %v1974, 0
    %2011 = vmatpush.msra.mxu0 0.0
    %2012 = vmatpush.msra.mxu0 0.0
    %2013 = vmatpush.msra.mxu0 0.0
    %2014 = vmatpush.msra.mxu0 0.0
    %2015 = vmatpush.msra.mxu0 0.0
    %2016 = vmatpush.msra.mxu0 0.0
    %2017 = vmatpush.msra.mxu0 0.0
    %2018 = vmatpush.msra.mxu0 0.0
    %2019 = vmatpush.msra.mxu0 0.0
    %2020 = vmatpush.msra.mxu0 0.0
    %2021 = vmatpush.msra.mxu0 0.0
    %2022 = vmatpush.msra.mxu0 0.0
    %2023 = vmatpush.msra.mxu0 %v1970
    %2024 = vmatpush.msra.mxu0 %v1969
    %2025 = vmatpush.msra.mxu0 %v1968
    %2026 = vmatpush.msra.mxu0 %v1967
    %2027 = vmatmul.f32.gmra.mxu0 %v2000
    %v2028 = vpop.f32.mrf.mxu0
    %v2029 = vadd.f32 %v1982, %v2028
    %2030 = vmatmul.f32.gmra.mxu0 %v2003
    %v2031 = vpop.f32.mrf.mxu0
    %v2032 = vadd.f32 %v1987, %v2031
    %2033 = vmatmul.f32.gmra.mxu0 %v2006
    %v2034 = vpop.f32.mrf.mxu0
    %v2035 = vadd.f32 %v1992, %v2034
    %2036 = vmatmul.f32.gmra.mxu0 %v2009
    %v2037 = vpop.f32.mrf.mxu0
    %v2038 = vadd.f32 %v1997, %v2037
    %2039 = vdwg.mxu0
    %v2040 = vadd.f32 %v2029, %v27
    %v2041 = vadd.f32 %v2032, %v28
    %v2042 = vadd.f32 %v2035, %v29
    %v2043 = vadd.f32 %v2038, %v30
    %2044 = vst.msk [vmem:[#allocation2] sm:$0xff] %vm115, %v2040
    %2045 = vst.msk [vmem:[#allocation2 + $0x8] sm:$0xff] %vm115, %v2041
    %2046 = vst.msk [vmem:[#allocation2 + $0x10] sm:$0xff] %vm115, %v2042
    %2047 = vst.msk [vmem:[#allocation2 + $0x18] sm:$0xff] %vm115, %v2043
    // Predicated region
    $region30: #{tpu_custom_call.1} parent=1 // pred_check
      _
    $region31: #{tpu_custom_call.1} parent=1 // pred_check_branch
      %2049 = sbr.rel (0) target = $region33
    $region32: #{tpu_custom_call.1} parent=1 // pred_region
      %2051 = vsyncadd [#allocation3], 0
      %s2052 = sshll.u32 [#allocation2], 4
      %s2053 = int_to_ptr.vmem [resolvable:$true] %s2052
      %s2054 = sshll.u32 %s7, 4
      %s2055 = int_to_ptr.hbm [resolvable:$true] %s2054
      %2060 = dma.vmem_to_hbm [thread:$0]  %s2053, 512, %s2055, [#allocation3], 128, 128, 8
    $region33: #{tpu_custom_call.1} parent=1 // pred_fallthru
      _
    // Predicated region
    $region34: #{tpu_custom_call.1} parent=1 // pred_check
      _
    $region35: #{tpu_custom_call.1} parent=1 // pred_check_branch
      %2062 = sbr.rel (0) target = $region37
    $region36: #{tpu_custom_call.1} parent=1 // pred_region
      %2064 = dma.done [#allocation3], 512
    $region37: #{tpu_custom_call.1} parent=1 // pred_fallthru
      _
    %2065 = vsyncpa [#allocation3], 1

</llo_original>
